<compile_context>
chip_gen: v6e
topology: v6e:2x2x1
jax: 0.10.0
libtpu: 0.0.40
codegen_flags: <defaults>
</compile_context>

<pallas_src>
import functools

import jax
import jax.numpy as jnp
from jax import lax
from jax.experimental import pallas as pl
from jax.experimental.pallas import tpu as pltpu

EPS = 1e-6
NEG_INF = -1e9


# ----------------------------------------------------------------------------
# LayerNorm (exact reference math; exact divide — the reciprocal count is tiny)
# ----------------------------------------------------------------------------
def _layernorm(x, alpha, bias):
    d = x.shape[-1]
    mean = jnp.mean(x, axis=-1, keepdims=True)
    var = jnp.sum((x - mean) ** 2, axis=-1, keepdims=True) * (1.0 / (d - 1))
    std = jnp.sqrt(var)
    return alpha * (x - mean) / (std + EPS) + bias


# ----------------------------------------------------------------------------
# Fused encoder kernel: grid = (batch_blocks, layer)
# ----------------------------------------------------------------------------
def encoder_kernel(x_ref, bias_ref, wqkv_ref, wo_ref, w1_ref, w2_ref,
                   sp_ref, fin_a_ref, fin_b_ref, o_ref, *, num_heads):
    layer = pl.program_id(1)
    num_layers = pl.num_programs(1)

    # Load the input activations into the resident output block on layer 0.
    @pl.when(layer == 0)
    def _init():
        o_ref[...] = x_ref[...]

    xb = o_ref[...]                       # (Bblk, S, D), resident across layers
    Bb, S, D = xb.shape
    H = num_heads
    dk = D // H
    Dff = w1_ref.shape[-1]
    rows = Bb * S

    x = xb.reshape(rows, D)

    # Packed small per-layer params: rows = ln1_a, ln1_b, ln2_a, ln2_b, b1, b2.
    sp = sp_ref[0]                        # (6, DMAX)
    ln1_a, ln1_b = sp[0:1, :D], sp[1:2, :D]
    ln2_a, ln2_b = sp[2:3, :D], sp[3:4, :D]
    b1 = sp[4:5, :Dff]
    b2 = sp[5:6, :D]

    attn_bias = bias_ref[...]             # (Bblk, S) additive mask: 0 or -1e9

    # ---- self-attention sublayer: x + MHA(LN1(x))  (pre-norm residual) ----
    xn = _layernorm(x, ln1_a, ln1_b)
    qkv = jnp.dot(xn, wqkv_ref[0], preferred_element_type=jnp.float32)
    scale = 1.0 / jnp.sqrt(jnp.float32(dk))
    q = (qkv[:, :D] * scale).reshape(Bb, S, D)   # fold 1/sqrt(dk) into Q once
    k = qkv[:, D:2 * D].reshape(Bb, S, D)
    v = qkv[:, 2 * D:].reshape(Bb, S, D)
    wo = wo_ref[0]

    attn = jnp.zeros((rows, D), jnp.float32)
    for h in range(H):                    # small static head loop (H = 4)
        sl = slice(h * dk, (h + 1) * dk)
        # Batched (over Bblk) Q @ K^T without materializing a transpose.
        s = lax.dot_general(q[:, :, sl], k[:, :, sl],
                            dimension_numbers=(((2,), (2,)), ((0,), (0,))),
                            preferred_element_type=jnp.float32)   # (Bb, S, S)
        s = s + attn_bias[:, None, :]
        s = s - jnp.max(s, axis=-1, keepdims=True)
        p = jnp.exp(s)
        p = p / jnp.sum(p, axis=-1, keepdims=True)                # exact divide
        hv = lax.dot_general(p, v[:, :, sl],
                             dimension_numbers=(((2,), (1,)), ((0,), (0,))),
                             preferred_element_type=jnp.float32)  # (Bb, S, dk)
        # concat(heads) @ Wo  ==  sum_h head_h @ Wo[h*dk:(h+1)*dk, :]
        # TODO(synk): for production dk, assemble heads and use one K=D Wo
        # matmul for full MXU contraction depth.
        attn = attn + jnp.dot(hv.reshape(rows, dk), wo[sl, :],
                              preferred_element_type=jnp.float32)
    # TODO(synk): dropout in the residual connections is identity (eval mode).
    x = x + attn

    # ---- feed-forward sublayer: x + FFN(LN2(x)) ----
    xn2 = _layernorm(x, ln2_a, ln2_b)
    hid = jnp.dot(xn2, w1_ref[0], preferred_element_type=jnp.float32) + b1
    hid = jnp.maximum(hid, 0.0)
    ff = jnp.dot(hid, w2_ref[0], preferred_element_type=jnp.float32) + b2
    y = x + ff

    # Final LayerNorm fused into the last layer's grid step; otherwise carry.
    @pl.when(layer == num_layers - 1)
    def _finalize():
        o_ref[...] = _layernorm(y, fin_a_ref[...],
                                fin_b_ref[...]).reshape(Bb, S, D)

    @pl.when(layer < num_layers - 1)
    def _carry():
        o_ref[...] = y.reshape(Bb, S, D)


# ----------------------------------------------------------------------------
# Wrapper
# ----------------------------------------------------------------------------
def encoder_forward(x, src_mask, layer_params, final_alpha, final_bias,
                    num_heads, batch_block=None):
    B, S, D = x.shape
    L = len(layer_params)
    Dff = layer_params[0]["w1"].shape[-1]
    DMAX = max(D, Dff)

    if batch_block is None:
        batch_block = B                   # whole batch resident per grid step
    assert B % batch_block == 0
    nb = B // batch_block

    def stack(name):
        return jnp.stack([p[name] for p in layer_params], axis=0)

    # Fused QKV projection weights: (L, D, 3D).
    wqkv = jnp.concatenate([stack("wq"), stack("wk"), stack("wv")], axis=-1)
    wo = stack("wo")                      # (L, D, D)
    w1 = stack("w1")                      # (L, D, Dff)
    w2 = stack("w2")                      # (L, Dff, D)

    # Pack the six tiny per-layer vectors into one (L, 6, DMAX) array.
    def pad_last(v):
        return jnp.pad(v, ((0, 0), (0, DMAX - v.shape[-1])))

    small = jnp.stack([
        jnp.concatenate([pad_last(p["ln1_a"]), pad_last(p["ln1_b"]),
                         pad_last(p["ln2_a"]), pad_last(p["ln2_b"]),
                         pad_last(p["b1"]), pad_last(p["b2"])], axis=0)
        for p in layer_params], axis=0)

    # Additive attention bias: 0 where attended, -1e9 where masked.  (B, S)
    attn_bias = jnp.where(src_mask[:, 0, 0, :] == 0.0,
                          NEG_INF, 0.0).astype(jnp.float32)

    # Size the scoped VMEM limit from the blocks (weights double-buffered).
    fb = 4
    weight_block = fb * (D * 3 * D + D * D + 2 * D * Dff + 6 * DMAX)
    act_block = fb * (batch_block * S * D + batch_block * S)
    est = 2 * weight_block + 4 * act_block + (2 << 20)
    vmem_limit = int(min(max(4 * est, 32 << 20), 96 << 20))
    # TODO(synk): at production D/Dff on v7x (64 MiB VMEM), cast weights to
    # bf16 for storage/DMA and tile the FFN over Dff.

    kernel = functools.partial(encoder_kernel, num_heads=num_heads)
    return pl.pallas_call(
        kernel,
        out_shape=jax.ShapeDtypeStruct((B, S, D), jnp.float32),
        grid=(nb, L),
        in_specs=[
            pl.BlockSpec((batch_block, S, D), lambda b, l: (b, 0, 0)),  # x
            pl.BlockSpec((batch_block, S), lambda b, l: (b, 0)),        # bias
            pl.BlockSpec((1, D, 3 * D), lambda b, l: (l, 0, 0)),        # wqkv
            pl.BlockSpec((1, D, D), lambda b, l: (l, 0, 0)),            # wo
            pl.BlockSpec((1, D, Dff), lambda b, l: (l, 0, 0)),          # w1
            pl.BlockSpec((1, Dff, D), lambda b, l: (l, 0, 0)),          # w2
            pl.BlockSpec((1, 6, DMAX), lambda b, l: (l, 0, 0)),         # small
            pl.BlockSpec((1, D), lambda b, l: (0, 0)),                  # fin_a
            pl.BlockSpec((1, D), lambda b, l: (0, 0)),                  # fin_b
        ],
        out_specs=pl.BlockSpec((batch_block, S, D), lambda b, l: (b, 0, 0)),
        compiler_params=pltpu.CompilerParams(
            dimension_semantics=("parallel", "arbitrary"),
            vmem_limit_bytes=vmem_limit),
    )(x, attn_bias, wqkv, wo, w1, w2, small, final_alpha, final_bias)


# ----------------------------------------------------------------------------
# Pure-JAX reference (exact spec math) for verification
# ----------------------------------------------------------------------------
def _layernorm_ref(x, alpha, bias):
    d = x.shape[-1]
    mean = jnp.mean(x, axis=-1, keepdims=True)
    var = jnp.sum((x - mean) ** 2, axis=-1, keepdims=True) / (d - 1)
    std = jnp.sqrt(var)
    return alpha * (x - mean) / (std + EPS) + bias


def encoder_forward_ref(x, src_mask, layer_params, final_alpha, final_bias,
                        num_heads):
    B, S, D = x.shape
    dk = D // num_heads
    mask = src_mask[:, 0, 0, :]                         # (B, S)
    for p in layer_params:
        xn = _layernorm_ref(x, p["ln1_a"], p["ln1_b"])
        q = xn @ p["wq"]
        k = xn @ p["wk"]
        v = xn @ p["wv"]
        qh = q.reshape(B, S, num_heads, dk)
        kh = k.reshape(B, S, num_heads, dk)
        vh = v.reshape(B, S, num_heads, dk)
        s = jnp.einsum("bqhd,bkhd->bhqk", qh, kh) / jnp.sqrt(jnp.float32(dk))
        s = jnp.where(mask[:, None, None, :] == 0.0, NEG_INF, s)
        s = s - jnp.max(s, axis=-1, keepdims=True)
        pr = jnp.exp(s)
        pr = pr / jnp.sum(pr, axis=-1, keepdims=True)
        attn = jnp.einsum("bhqk,bkhd->bqhd", pr, vh).reshape(B, S, D)
        x = x + attn @ p["wo"]
        xn2 = _layernorm_ref(x, p["ln2_a"], p["ln2_b"])
        hid = jnp.maximum(xn2 @ p["w1"] + p["b1"], 0.0)
        x = x + hid @ p["w2"] + p["b2"]
    return _layernorm_ref(x, final_alpha, final_bias)


# ----------------------------------------------------------------------------
# Main
# ----------------------------------------------------------------------------
if __name__ == "__main__":
    B, S, D, H, DFF, N_LAYERS = 2, 8, 32, 4, 64, 2

    key = jax.random.PRNGKey(0)
    key, kx = jax.random.split(key)
    x = jax.random.normal(kx, (B, S, D), dtype=jnp.float32)

    # src_mask: (B, 1, 1, S); batch 1 has its last 3 key positions masked out.
    src_mask = jnp.ones((B, 1, 1, S), dtype=jnp.float32)
    src_mask = src_mask.at[1, 0, 0, S - 3:].set(0.0)

    layer_params = []
    for _ in range(N_LAYERS):
        key, k1, k2, k3, k4, k5, k6 = jax.random.split(key, 7)
        layer_params.append({
            "ln1_a": jnp.ones((1, D), jnp.float32),
            "ln1_b": jnp.zeros((1, D), jnp.float32),
            "wq": 0.05 * jax.random.normal(k1, (D, D), jnp.float32),
            "wk": 0.05 * jax.random.normal(k2, (D, D), jnp.float32),
            "wv": 0.05 * jax.random.normal(k3, (D, D), jnp.float32),
            "wo": 0.05 * jax.random.normal(k4, (D, D), jnp.float32),
            "ln2_a": jnp.ones((1, D), jnp.float32),
            "ln2_b": jnp.zeros((1, D), jnp.float32),
            "w1": 0.05 * jax.random.normal(k5, (D, DFF), jnp.float32),
            "b1": jnp.zeros((1, DFF), jnp.float32),
            "w2": 0.05 * jax.random.normal(k6, (DFF, D), jnp.float32),
            "b2": jnp.zeros((1, D), jnp.float32),
        })
    final_alpha = jnp.ones((1, D), jnp.float32)
    final_bias = jnp.zeros((1, D), jnp.float32)

    out = encoder_forward(x, src_mask, layer_params, final_alpha, final_bias, H)
    out = jax.block_until_ready(out)

    ref = encoder_forward_ref(x, src_mask, layer_params, final_alpha,
                              final_bias, H)
    max_err = float(jnp.max(jnp.abs(out - ref)))
    assert out.shape == (B, S, D)
    assert max_err < 2e-3, f"mismatch vs reference: {max_err}"
    print("KERNEL_OK")
</pallas_src>

<mosaic_0001>
module attributes {stable_mosaic.version = 11 : i64} {
  func.func @encoder_kernel(%arg0: i32, %arg1: i32, %arg2: memref<2x8x32xf32, #tpu.memory_space<vmem>>, %arg3: memref<2x8xf32, #tpu.memory_space<vmem>>, %arg4: memref<1x32x96xf32, #tpu.memory_space<vmem>>, %arg5: memref<1x32x32xf32, #tpu.memory_space<vmem>>, %arg6: memref<1x32x64xf32, #tpu.memory_space<vmem>>, %arg7: memref<1x64x32xf32, #tpu.memory_space<vmem>>, %arg8: memref<1x6x64xf32, #tpu.memory_space<vmem>>, %arg9: memref<1x32xf32, #tpu.memory_space<vmem>>, %arg10: memref<1x32xf32, #tpu.memory_space<vmem>>, %arg11: memref<2x8x32xf32, #tpu.memory_space<vmem>>) attributes {dimension_semantics = [#tpu.dimension_semantics<parallel>, #tpu.dimension_semantics<arbitrary>], iteration_bounds = array<i64: 1, 2>, scalar_prefetch = 0 : i64, scratch_operands = 0 : i64, tpu.core_type = #tpu.core_type<tc>, window_params = [{transform_indices = @transform_0, window_bounds = array<i64: 2, 8, 32>}, {transform_indices = @transform_1, window_bounds = array<i64: 2, 8>}, {transform_indices = @transform_2, window_bounds = array<i64: 1, 32, 96>}, {transform_indices = @transform_3, window_bounds = array<i64: 1, 32, 32>}, {transform_indices = @transform_4, window_bounds = array<i64: 1, 32, 64>}, {transform_indices = @transform_5, window_bounds = array<i64: 1, 64, 32>}, {transform_indices = @transform_6, window_bounds = array<i64: 1, 6, 64>}, {pipeline_mode = #tpu.pipeline_mode<synchronous>, transform_indices = @transform_7, window_bounds = array<i64: 1, 32>}, {pipeline_mode = #tpu.pipeline_mode<synchronous>, transform_indices = @transform_8, window_bounds = array<i64: 1, 32>}, {transform_indices = @transform_9, window_bounds = array<i64: 2, 8, 32>}]} {
    %c0_i32 = arith.constant 0 : i32
    %0 = arith.cmpi eq, %arg1, %c0_i32 : i32
    %1 = arith.extui %0 : i1 to i32
    %c0_i32_0 = arith.constant 0 : i32
    %2 = arith.cmpi ne, %1, %c0_i32_0 : i32
    scf.if %2 {
      %c0_59 = arith.constant 0 : index
      %c0_60 = arith.constant 0 : index
      %c0_61 = arith.constant 0 : index
      %178 = vector.load %arg2[%c0_59, %c0_60, %c0_61] : memref<2x8x32xf32, #tpu.memory_space<vmem>>, vector<2x8x32xf32>
      %c0_62 = arith.constant 0 : index
      %c0_63 = arith.constant 0 : index
      %c0_64 = arith.constant 0 : index
      %179 = vector.load %arg11[%c0_62, %c0_63, %c0_64] : memref<2x8x32xf32, #tpu.memory_space<vmem>>, vector<2x8x32xf32>
      tpu.vector_store %arg11[%c0_62, %c0_63, %c0_64], %178 {strides = array<i32>} : memref<2x8x32xf32, #tpu.memory_space<vmem>>, vector<2x8x32xf32>,
    } else {
    }
    %c0 = arith.constant 0 : index
    %c0_1 = arith.constant 0 : index
    %c0_2 = arith.constant 0 : index
    %3 = vector.load %arg11[%c0, %c0_1, %c0_2] : memref<2x8x32xf32, #tpu.memory_space<vmem>>, vector<2x8x32xf32>
    %4 = vector.shape_cast %3 : vector<2x8x32xf32> to vector<16x32xf32>
    %c0_3 = arith.constant 0 : index
    %c0_4 = arith.constant 0 : index
    %c0_5 = arith.constant 0 : index
    %5 = vector.load %arg8[%c0_3, %c0_4, %c0_5] : memref<1x6x64xf32, #tpu.memory_space<vmem>>, vector<1x6x64xf32>
    %6 = vector.shape_cast %5 : vector<1x6x64xf32> to vector<6x64xf32>
    %7 = vector.extract_strided_slice %6 {offsets = [0, 0], sizes = [1, 32], strides = [1, 1]} : vector<6x64xf32> to vector<1x32xf32>
    %8 = vector.extract_strided_slice %6 {offsets = [1, 0], sizes = [1, 32], strides = [1, 1]} : vector<6x64xf32> to vector<1x32xf32>
    %9 = vector.extract_strided_slice %6 {offsets = [2, 0], sizes = [1, 32], strides = [1, 1]} : vector<6x64xf32> to vector<1x32xf32>
    %10 = vector.extract_strided_slice %6 {offsets = [3, 0], sizes = [1, 32], strides = [1, 1]} : vector<6x64xf32> to vector<1x32xf32>
    %11 = vector.extract_strided_slice %6 {offsets = [4, 0], sizes = [1, 64], strides = [1, 1]} : vector<6x64xf32> to vector<1x64xf32>
    %12 = vector.extract_strided_slice %6 {offsets = [5, 0], sizes = [1, 32], strides = [1, 1]} : vector<6x64xf32> to vector<1x32xf32>
    %c0_6 = arith.constant 0 : index
    %c0_7 = arith.constant 0 : index
    %13 = vector.load %arg3[%c0_6, %c0_7] : memref<2x8xf32, #tpu.memory_space<vmem>>, vector<2x8xf32>
    %cst = arith.constant dense<0.000000e+00> : vector<16xf32>
    %14 = vector.multi_reduction <add>, %4, %cst [1] : vector<16x32xf32> to vector<16xf32>
    %15 = vector.shape_cast %14 : vector<16xf32> to vector<16x1xf32>
    %cst_8 = arith.constant 3.200000e+01 : f32
    %16 = vector.broadcast %cst_8 : f32 to vector<16x1xf32>
    %17 = arith.divf %15, %16 : vector<16x1xf32>
    %18 = vector.broadcast %17 : vector<16x1xf32> to vector<16x32xf32>
    %19 = arith.subf %4, %18 : vector<16x32xf32>
    %20 = arith.mulf %19, %19 : vector<16x32xf32>
    %cst_9 = arith.constant dense<0.000000e+00> : vector<16xf32>
    %21 = vector.multi_reduction <add>, %20, %cst_9 [1] : vector<16x32xf32> to vector<16xf32>
    %22 = vector.shape_cast %21 : vector<16xf32> to vector<16x1xf32>
    %cst_10 = arith.constant 0.0322580636 : f32
    %23 = vector.broadcast %cst_10 : f32 to vector<16x1xf32>
    %24 = arith.mulf %22, %23 : vector<16x1xf32>
    %25 = math.sqrt %24 : vector<16x1xf32>
    %26 = vector.broadcast %17 : vector<16x1xf32> to vector<16x32xf32>
    %27 = arith.subf %4, %26 : vector<16x32xf32>
    %28 = vector.broadcast %7 : vector<1x32xf32> to vector<16x32xf32>
    %29 = arith.mulf %28, %27 : vector<16x32xf32>
    %cst_11 = arith.constant 9.99999997E-7 : f32
    %30 = vector.broadcast %cst_11 : f32 to vector<16x1xf32>
    %31 = arith.addf %25, %30 : vector<16x1xf32>
    %32 = vector.broadcast %31 : vector<16x1xf32> to vector<16x32xf32>
    %33 = arith.divf %29, %32 : vector<16x32xf32>
    %34 = vector.broadcast %8 : vector<1x32xf32> to vector<16x32xf32>
    %35 = arith.addf %33, %34 : vector<16x32xf32>
    %c0_12 = arith.constant 0 : index
    %c0_13 = arith.constant 0 : index
    %c0_14 = arith.constant 0 : index
    %36 = vector.load %arg4[%c0_12, %c0_13, %c0_14] : memref<1x32x96xf32, #tpu.memory_space<vmem>>, vector<1x32x96xf32>
    %37 = vector.shape_cast %36 : vector<1x32x96xf32> to vector<32x96xf32>
    %cst_15 = arith.constant dense<0.000000e+00> : vector<16x96xf32>
    %38 = tpu.matmul %35, %37, %cst_15 {dimension_numbers = #tpu.dot_dimension_numbers<[1], [0], [0], [1], [0, 0, 1, 1], [], []>} : vector<16x32xf32>, vector<32x96xf32>, vector<16x96xf32> -> vector<16x96xf32>
    %cst_16 = arith.constant 8.000000e+00 : f32
    %39 = math.sqrt %cst_16 : f32
    %cst_17 = arith.constant 1.000000e+00 : f32
    %40 = arith.divf %cst_17, %39 : f32
    %41 = vector.extract_strided_slice %38 {offsets = [0, 0], sizes = [16, 32], strides = [1, 1]} : vector<16x96xf32> to vector<16x32xf32>
    %42 = vector.broadcast %40 : f32 to vector<16x32xf32>
    %43 = arith.mulf %41, %42 : vector<16x32xf32>
    %44 = vector.shape_cast %43 : vector<16x32xf32> to vector<2x8x32xf32>
    %45 = vector.extract_strided_slice %38 {offsets = [0, 32], sizes = [16, 32], strides = [1, 1]} : vector<16x96xf32> to vector<16x32xf32>
    %46 = vector.shape_cast %45 : vector<16x32xf32> to vector<2x8x32xf32>
    %47 = vector.extract_strided_slice %38 {offsets = [0, 64], sizes = [16, 32], strides = [1, 1]} : vector<16x96xf32> to vector<16x32xf32>
    %48 = vector.shape_cast %47 : vector<16x32xf32> to vector<2x8x32xf32>
    %c0_18 = arith.constant 0 : index
    %c0_19 = arith.constant 0 : index
    %c0_20 = arith.constant 0 : index
    %49 = vector.load %arg5[%c0_18, %c0_19, %c0_20] : memref<1x32x32xf32, #tpu.memory_space<vmem>>, vector<1x32x32xf32>
    %50 = vector.shape_cast %49 : vector<1x32x32xf32> to vector<32x32xf32>
    %cst_21 = arith.constant 0.000000e+00 : f32
    %51 = vector.broadcast %cst_21 : f32 to vector<16x32xf32>
    %52 = vector.extract_strided_slice %44 {offsets = [0, 0, 0], sizes = [2, 8, 8], strides = [1, 1, 1]} : vector<2x8x32xf32> to vector<2x8x8xf32>
    %53 = vector.extract_strided_slice %46 {offsets = [0, 0, 0], sizes = [2, 8, 8], strides = [1, 1, 1]} : vector<2x8x32xf32> to vector<2x8x8xf32>
    %cst_22 = arith.constant dense<0.000000e+00> : vector<2x8x8xf32>
    %54 = tpu.matmul %52, %53, %cst_22 {dimension_numbers = #tpu.dot_dimension_numbers<[2], [2], [1], [1], [0, 0, 0, 1, 1, 1], [0], [0]>} : vector<2x8x8xf32>, vector<2x8x8xf32>, vector<2x8x8xf32> -> vector<2x8x8xf32>
    %55 = vector.shape_cast %13 : vector<2x8xf32> to vector<2x1x8xf32>
    %56 = vector.broadcast %55 : vector<2x1x8xf32> to vector<2x8x8xf32>
    %57 = arith.addf %54, %56 : vector<2x8x8xf32>
    %cst_23 = arith.constant dense<0xFF800000> : vector<2x8xf32>
    %58 = vector.multi_reduction <maximumf>, %57, %cst_23 [2] : vector<2x8x8xf32> to vector<2x8xf32>
    %59 = vector.shape_cast %58 : vector<2x8xf32> to vector<2x8x1xf32>
    %60 = vector.broadcast %59 : vector<2x8x1xf32> to vector<2x8x8xf32>
    %61 = arith.subf %57, %60 : vector<2x8x8xf32>
    %62 = math.exp %61 : vector<2x8x8xf32>
    %cst_24 = arith.constant dense<0.000000e+00> : vector<2x8xf32>
    %63 = vector.multi_reduction <add>, %62, %cst_24 [2] : vector<2x8x8xf32> to vector<2x8xf32>
    %64 = vector.shape_cast %63 : vector<2x8xf32> to vector<2x8x1xf32>
    %65 = vector.broadcast %64 : vector<2x8x1xf32> to vector<2x8x8xf32>
    %66 = arith.divf %62, %65 : vector<2x8x8xf32>
    %67 = vector.extract_strided_slice %48 {offsets = [0, 0, 0], sizes = [2, 8, 8], strides = [1, 1, 1]} : vector<2x8x32xf32> to vector<2x8x8xf32>
    %cst_25 = arith.constant dense<0.000000e+00> : vector<2x8x8xf32>
    %68 = tpu.matmul %66, %67, %cst_25 {dimension_numbers = #tpu.dot_dimension_numbers<[2], [1], [1], [2], [0, 0, 0, 1, 1, 2], [0], [0]>} : vector<2x8x8xf32>, vector<2x8x8xf32>, vector<2x8x8xf32> -> vector<2x8x8xf32>
    %69 = vector.shape_cast %68 : vector<2x8x8xf32> to vector<16x8xf32>
    %70 = vector.extract_strided_slice %50 {offsets = [0, 0], sizes = [8, 32], strides = [1, 1]} : vector<32x32xf32> to vector<8x32xf32>
    %cst_26 = arith.constant dense<0.000000e+00> : vector<16x32xf32>
    %71 = tpu.matmul %69, %70, %cst_26 {dimension_numbers = #tpu.dot_dimension_numbers<[1], [0], [0], [1], [0, 0, 1, 1], [], []>} : vector<16x8xf32>, vector<8x32xf32>, vector<16x32xf32> -> vector<16x32xf32>
    %72 = arith.addf %51, %71 : vector<16x32xf32>
    %73 = vector.extract_strided_slice %44 {offsets = [0, 0, 8], sizes = [2, 8, 8], strides = [1, 1, 1]} : vector<2x8x32xf32> to vector<2x8x8xf32>
    %74 = vector.extract_strided_slice %46 {offsets = [0, 0, 8], sizes = [2, 8, 8], strides = [1, 1, 1]} : vector<2x8x32xf32> to vector<2x8x8xf32>
    %cst_27 = arith.constant dense<0.000000e+00> : vector<2x8x8xf32>
    %75 = tpu.matmul %73, %74, %cst_27 {dimension_numbers = #tpu.dot_dimension_numbers<[2], [2], [1], [1], [0, 0, 0, 1, 1, 1], [0], [0]>} : vector<2x8x8xf32>, vector<2x8x8xf32>, vector<2x8x8xf32> -> vector<2x8x8xf32>
    %76 = vector.shape_cast %13 : vector<2x8xf32> to vector<2x1x8xf32>
    %77 = vector.broadcast %76 : vector<2x1x8xf32> to vector<2x8x8xf32>
    %78 = arith.addf %75, %77 : vector<2x8x8xf32>
    %cst_28 = arith.constant dense<0xFF800000> : vector<2x8xf32>
    %79 = vector.multi_reduction <maximumf>, %78, %cst_28 [2] : vector<2x8x8xf32> to vector<2x8xf32>
    %80 = vector.shape_cast %79 : vector<2x8xf32> to vector<2x8x1xf32>
    %81 = vector.broadcast %80 : vector<2x8x1xf32> to vector<2x8x8xf32>
    %82 = arith.subf %78, %81 : vector<2x8x8xf32>
    %83 = math.exp %82 : vector<2x8x8xf32>
    %cst_29 = arith.constant dense<0.000000e+00> : vector<2x8xf32>
    %84 = vector.multi_reduction <add>, %83, %cst_29 [2] : vector<2x8x8xf32> to vector<2x8xf32>
    %85 = vector.shape_cast %84 : vector<2x8xf32> to vector<2x8x1xf32>
    %86 = vector.broadcast %85 : vector<2x8x1xf32> to vector<2x8x8xf32>
    %87 = arith.divf %83, %86 : vector<2x8x8xf32>
    %88 = vector.extract_strided_slice %48 {offsets = [0, 0, 8], sizes = [2, 8, 8], strides = [1, 1, 1]} : vector<2x8x32xf32> to vector<2x8x8xf32>
    %cst_30 = arith.constant dense<0.000000e+00> : vector<2x8x8xf32>
    %89 = tpu.matmul %87, %88, %cst_30 {dimension_numbers = #tpu.dot_dimension_numbers<[2], [1], [1], [2], [0, 0, 0, 1, 1, 2], [0], [0]>} : vector<2x8x8xf32>, vector<2x8x8xf32>, vector<2x8x8xf32> -> vector<2x8x8xf32>
    %90 = vector.shape_cast %89 : vector<2x8x8xf32> to vector<16x8xf32>
    %91 = vector.extract_strided_slice %50 {offsets = [8, 0], sizes = [8, 32], strides = [1, 1]} : vector<32x32xf32> to vector<8x32xf32>
    %cst_31 = arith.constant dense<0.000000e+00> : vector<16x32xf32>
    %92 = tpu.matmul %90, %91, %cst_31 {dimension_numbers = #tpu.dot_dimension_numbers<[1], [0], [0], [1], [0, 0, 1, 1], [], []>} : vector<16x8xf32>, vector<8x32xf32>, vector<16x32xf32> -> vector<16x32xf32>
    %93 = arith.addf %72, %92 : vector<16x32xf32>
    %94 = vector.extract_strided_slice %44 {offsets = [0, 0, 16], sizes = [2, 8, 8], strides = [1, 1, 1]} : vector<2x8x32xf32> to vector<2x8x8xf32>
    %95 = vector.extract_strided_slice %46 {offsets = [0, 0, 16], sizes = [2, 8, 8], strides = [1, 1, 1]} : vector<2x8x32xf32> to vector<2x8x8xf32>
    %cst_32 = arith.constant dense<0.000000e+00> : vector<2x8x8xf32>
    %96 = tpu.matmul %94, %95, %cst_32 {dimension_numbers = #tpu.dot_dimension_numbers<[2], [2], [1], [1], [0, 0, 0, 1, 1, 1], [0], [0]>} : vector<2x8x8xf32>, vector<2x8x8xf32>, vector<2x8x8xf32> -> vector<2x8x8xf32>
    %97 = vector.shape_cast %13 : vector<2x8xf32> to vector<2x1x8xf32>
    %98 = vector.broadcast %97 : vector<2x1x8xf32> to vector<2x8x8xf32>
    %99 = arith.addf %96, %98 : vector<2x8x8xf32>
    %cst_33 = arith.constant dense<0xFF800000> : vector<2x8xf32>
    %100 = vector.multi_reduction <maximumf>, %99, %cst_33 [2] : vector<2x8x8xf32> to vector<2x8xf32>
    %101 = vector.shape_cast %100 : vector<2x8xf32> to vector<2x8x1xf32>
    %102 = vector.broadcast %101 : vector<2x8x1xf32> to vector<2x8x8xf32>
    %103 = arith.subf %99, %102 : vector<2x8x8xf32>
    %104 = math.exp %103 : vector<2x8x8xf32>
    %cst_34 = arith.constant dense<0.000000e+00> : vector<2x8xf32>
    %105 = vector.multi_reduction <add>, %104, %cst_34 [2] : vector<2x8x8xf32> to vector<2x8xf32>
    %106 = vector.shape_cast %105 : vector<2x8xf32> to vector<2x8x1xf32>
    %107 = vector.broadcast %106 : vector<2x8x1xf32> to vector<2x8x8xf32>
    %108 = arith.divf %104, %107 : vector<2x8x8xf32>
    %109 = vector.extract_strided_slice %48 {offsets = [0, 0, 16], sizes = [2, 8, 8], strides = [1, 1, 1]} : vector<2x8x32xf32> to vector<2x8x8xf32>
    %cst_35 = arith.constant dense<0.000000e+00> : vector<2x8x8xf32>
    %110 = tpu.matmul %108, %109, %cst_35 {dimension_numbers = #tpu.dot_dimension_numbers<[2], [1], [1], [2], [0, 0, 0, 1, 1, 2], [0], [0]>} : vector<2x8x8xf32>, vector<2x8x8xf32>, vector<2x8x8xf32> -> vector<2x8x8xf32>
    %111 = vector.shape_cast %110 : vector<2x8x8xf32> to vector<16x8xf32>
    %112 = vector.extract_strided_slice %50 {offsets = [16, 0], sizes = [8, 32], strides = [1, 1]} : vector<32x32xf32> to vector<8x32xf32>
    %cst_36 = arith.constant dense<0.000000e+00> : vector<16x32xf32>
    %113 = tpu.matmul %111, %112, %cst_36 {dimension_numbers = #tpu.dot_dimension_numbers<[1], [0], [0], [1], [0, 0, 1, 1], [], []>} : vector<16x8xf32>, vector<8x32xf32>, vector<16x32xf32> -> vector<16x32xf32>
    %114 = arith.addf %93, %113 : vector<16x32xf32>
    %115 = vector.extract_strided_slice %44 {offsets = [0, 0, 24], sizes = [2, 8, 8], strides = [1, 1, 1]} : vector<2x8x32xf32> to vector<2x8x8xf32>
    %116 = vector.extract_strided_slice %46 {offsets = [0, 0, 24], sizes = [2, 8, 8], strides = [1, 1, 1]} : vector<2x8x32xf32> to vector<2x8x8xf32>
    %cst_37 = arith.constant dense<0.000000e+00> : vector<2x8x8xf32>
    %117 = tpu.matmul %115, %116, %cst_37 {dimension_numbers = #tpu.dot_dimension_numbers<[2], [2], [1], [1], [0, 0, 0, 1, 1, 1], [0], [0]>} : vector<2x8x8xf32>, vector<2x8x8xf32>, vector<2x8x8xf32> -> vector<2x8x8xf32>
    %118 = vector.shape_cast %13 : vector<2x8xf32> to vector<2x1x8xf32>
    %119 = vector.broadcast %118 : vector<2x1x8xf32> to vector<2x8x8xf32>
    %120 = arith.addf %117, %119 : vector<2x8x8xf32>
    %cst_38 = arith.constant dense<0xFF800000> : vector<2x8xf32>
    %121 = vector.multi_reduction <maximumf>, %120, %cst_38 [2] : vector<2x8x8xf32> to vector<2x8xf32>
    %122 = vector.shape_cast %121 : vector<2x8xf32> to vector<2x8x1xf32>
    %123 = vector.broadcast %122 : vector<2x8x1xf32> to vector<2x8x8xf32>
    %124 = arith.subf %120, %123 : vector<2x8x8xf32>
    %125 = math.exp %124 : vector<2x8x8xf32>
    %cst_39 = arith.constant dense<0.000000e+00> : vector<2x8xf32>
    %126 = vector.multi_reduction <add>, %125, %cst_39 [2] : vector<2x8x8xf32> to vector<2x8xf32>
    %127 = vector.shape_cast %126 : vector<2x8xf32> to vector<2x8x1xf32>
    %128 = vector.broadcast %127 : vector<2x8x1xf32> to vector<2x8x8xf32>
    %129 = arith.divf %125, %128 : vector<2x8x8xf32>
    %130 = vector.extract_strided_slice %48 {offsets = [0, 0, 24], sizes = [2, 8, 8], strides = [1, 1, 1]} : vector<2x8x32xf32> to vector<2x8x8xf32>
    %cst_40 = arith.constant dense<0.000000e+00> : vector<2x8x8xf32>
    %131 = tpu.matmul %129, %130, %cst_40 {dimension_numbers = #tpu.dot_dimension_numbers<[2], [1], [1], [2], [0, 0, 0, 1, 1, 2], [0], [0]>} : vector<2x8x8xf32>, vector<2x8x8xf32>, vector<2x8x8xf32> -> vector<2x8x8xf32>
    %132 = vector.shape_cast %131 : vector<2x8x8xf32> to vector<16x8xf32>
    %133 = vector.extract_strided_slice %50 {offsets = [24, 0], sizes = [8, 32], strides = [1, 1]} : vector<32x32xf32> to vector<8x32xf32>
    %cst_41 = arith.constant dense<0.000000e+00> : vector<16x32xf32>
    %134 = tpu.matmul %132, %133, %cst_41 {dimension_numbers = #tpu.dot_dimension_numbers<[1], [0], [0], [1], [0, 0, 1, 1], [], []>} : vector<16x8xf32>, vector<8x32xf32>, vector<16x32xf32> -> vector<16x32xf32>
    %135 = arith.addf %114, %134 : vector<16x32xf32>
    %136 = arith.addf %4, %135 : vector<16x32xf32>
    %cst_42 = arith.constant dense<0.000000e+00> : vector<16xf32>
    %137 = vector.multi_reduction <add>, %136, %cst_42 [1] : vector<16x32xf32> to vector<16xf32>
    %138 = vector.shape_cast %137 : vector<16xf32> to vector<16x1xf32>
    %cst_43 = arith.constant 3.200000e+01 : f32
    %139 = vector.broadcast %cst_43 : f32 to vector<16x1xf32>
    %140 = arith.divf %138, %139 : vector<16x1xf32>
    %141 = vector.broadcast %140 : vector<16x1xf32> to vector<16x32xf32>
    %142 = arith.subf %136, %141 : vector<16x32xf32>
    %143 = arith.mulf %142, %142 : vector<16x32xf32>
    %cst_44 = arith.constant dense<0.000000e+00> : vector<16xf32>
    %144 = vector.multi_reduction <add>, %143, %cst_44 [1] : vector<16x32xf32> to vector<16xf32>
    %145 = vector.shape_cast %144 : vector<16xf32> to vector<16x1xf32>
    %cst_45 = arith.constant 0.0322580636 : f32
    %146 = vector.broadcast %cst_45 : f32 to vector<16x1xf32>
    %147 = arith.mulf %145, %146 : vector<16x1xf32>
    %148 = math.sqrt %147 : vector<16x1xf32>
    %149 = vector.broadcast %140 : vector<16x1xf32> to vector<16x32xf32>
    %150 = arith.subf %136, %149 : vector<16x32xf32>
    %151 = vector.broadcast %9 : vector<1x32xf32> to vector<16x32xf32>
    %152 = arith.mulf %151, %150 : vector<16x32xf32>
    %cst_46 = arith.constant 9.99999997E-7 : f32
    %153 = vector.broadcast %cst_46 : f32 to vector<16x1xf32>
    %154 = arith.addf %148, %153 : vector<16x1xf32>
    %155 = vector.broadcast %154 : vector<16x1xf32> to vector<16x32xf32>
    %156 = arith.divf %152, %155 : vector<16x32xf32>
    %157 = vector.broadcast %10 : vector<1x32xf32> to vector<16x32xf32>
    %158 = arith.addf %156, %157 : vector<16x32xf32>
    %c0_47 = arith.constant 0 : index
    %c0_48 = arith.constant 0 : index
    %c0_49 = arith.constant 0 : index
    %159 = vector.load %arg6[%c0_47, %c0_48, %c0_49] : memref<1x32x64xf32, #tpu.memory_space<vmem>>, vector<1x32x64xf32>
    %160 = vector.shape_cast %159 : vector<1x32x64xf32> to vector<32x64xf32>
    %cst_50 = arith.constant dense<0.000000e+00> : vector<16x64xf32>
    %161 = tpu.matmul %158, %160, %cst_50 {dimension_numbers = #tpu.dot_dimension_numbers<[1], [0], [0], [1], [0, 0, 1, 1], [], []>} : vector<16x32xf32>, vector<32x64xf32>, vector<16x64xf32> -> vector<16x64xf32>
    %162 = vector.broadcast %11 : vector<1x64xf32> to vector<16x64xf32>
    %163 = arith.addf %161, %162 : vector<16x64xf32>
    %cst_51 = arith.constant 0.000000e+00 : f32
    %164 = vector.broadcast %cst_51 : f32 to vector<16x64xf32>
    %165 = arith.maximumf %163, %164 : vector<16x64xf32>
    %c0_52 = arith.constant 0 : index
    %c0_53 = arith.constant 0 : index
    %c0_54 = arith.constant 0 : index
    %166 = vector.load %arg7[%c0_52, %c0_53, %c0_54] : memref<1x64x32xf32, #tpu.memory_space<vmem>>, vector<1x64x32xf32>
    %167 = vector.shape_cast %166 : vector<1x64x32xf32> to vector<64x32xf32>
    %cst_55 = arith.constant dense<0.000000e+00> : vector<16x32xf32>
    %168 = tpu.matmul %165, %167, %cst_55 {dimension_numbers = #tpu.dot_dimension_numbers<[1], [0], [0], [1], [0, 0, 1, 1], [], []>} : vector<16x64xf32>, vector<64x32xf32>, vector<16x32xf32> -> vector<16x32xf32>
    %169 = vector.broadcast %12 : vector<1x32xf32> to vector<16x32xf32>
    %170 = arith.addf %168, %169 : vector<16x32xf32>
    %171 = arith.addf %136, %170 : vector<16x32xf32>
    %c1_i32 = arith.constant 1 : i32
    %172 = arith.cmpi eq, %arg1, %c1_i32 : i32
    %173 = arith.extui %172 : i1 to i32
    %c0_i32_56 = arith.constant 0 : i32
    %174 = arith.cmpi ne, %173, %c0_i32_56 : i32
    scf.if %174 {
      %c0_59 = arith.constant 0 : index
      %c0_60 = arith.constant 0 : index
      %178 = vector.load %arg9[%c0_59, %c0_60] : memref<1x32xf32, #tpu.memory_space<vmem>>, vector<1x32xf32>
      %c0_61 = arith.constant 0 : index
      %c0_62 = arith.constant 0 : index
      %179 = vector.load %arg10[%c0_61, %c0_62] : memref<1x32xf32, #tpu.memory_space<vmem>>, vector<1x32xf32>
      %cst_63 = arith.constant dense<0.000000e+00> : vector<16xf32>
      %180 = vector.multi_reduction <add>, %171, %cst_63 [1] : vector<16x32xf32> to vector<16xf32>
      %181 = vector.shape_cast %180 : vector<16xf32> to vector<16x1xf32>
      %cst_64 = arith.constant 3.200000e+01 : f32
      %182 = vector.broadcast %cst_64 : f32 to vector<16x1xf32>
      %183 = arith.divf %181, %182 : vector<16x1xf32>
      %184 = vector.broadcast %183 : vector<16x1xf32> to vector<16x32xf32>
      %185 = arith.subf %171, %184 : vector<16x32xf32>
      %186 = arith.mulf %185, %185 : vector<16x32xf32>
      %cst_65 = arith.constant dense<0.000000e+00> : vector<16xf32>
      %187 = vector.multi_reduction <add>, %186, %cst_65 [1] : vector<16x32xf32> to vector<16xf32>
      %188 = vector.shape_cast %187 : vector<16xf32> to vector<16x1xf32>
      %cst_66 = arith.constant 0.0322580636 : f32
      %189 = vector.broadcast %cst_66 : f32 to vector<16x1xf32>
      %190 = arith.mulf %188, %189 : vector<16x1xf32>
      %191 = math.sqrt %190 : vector<16x1xf32>
      %192 = vector.broadcast %183 : vector<16x1xf32> to vector<16x32xf32>
      %193 = arith.subf %171, %192 : vector<16x32xf32>
      %194 = vector.broadcast %178 : vector<1x32xf32> to vector<16x32xf32>
      %195 = arith.mulf %194, %193 : vector<16x32xf32>
      %cst_67 = arith.constant 9.99999997E-7 : f32
      %196 = vector.broadcast %cst_67 : f32 to vector<16x1xf32>
      %197 = arith.addf %191, %196 : vector<16x1xf32>
      %198 = vector.broadcast %197 : vector<16x1xf32> to vector<16x32xf32>
      %199 = arith.divf %195, %198 : vector<16x32xf32>
      %200 = vector.broadcast %179 : vector<1x32xf32> to vector<16x32xf32>
      %201 = arith.addf %199, %200 : vector<16x32xf32>
      %202 = vector.shape_cast %201 : vector<16x32xf32> to vector<2x8x32xf32>
      %c0_68 = arith.constant 0 : index
      %c0_69 = arith.constant 0 : index
      %c0_70 = arith.constant 0 : index
      %203 = vector.load %arg11[%c0_68, %c0_69, %c0_70] : memref<2x8x32xf32, #tpu.memory_space<vmem>>, vector<2x8x32xf32>
      tpu.vector_store %arg11[%c0_68, %c0_69, %c0_70], %202 {strides = array<i32>} : memref<2x8x32xf32, #tpu.memory_space<vmem>>, vector<2x8x32xf32>,
    } else {
    }
    %c1_i32_57 = arith.constant 1 : i32
    %175 = arith.cmpi slt, %arg1, %c1_i32_57 : i32
    %176 = arith.extui %175 : i1 to i32
    %c0_i32_58 = arith.constant 0 : i32
    %177 = arith.cmpi ne, %176, %c0_i32_58 : i32
    scf.if %177 {
      %178 = vector.shape_cast %171 : vector<16x32xf32> to vector<2x8x32xf32>
      %c0_59 = arith.constant 0 : index
      %c0_60 = arith.constant 0 : index
      %c0_61 = arith.constant 0 : index
      %179 = vector.load %arg11[%c0_59, %c0_60, %c0_61] : memref<2x8x32xf32, #tpu.memory_space<vmem>>, vector<2x8x32xf32>
      tpu.vector_store %arg11[%c0_59, %c0_60, %c0_61], %178 {strides = array<i32>} : memref<2x8x32xf32, #tpu.memory_space<vmem>>, vector<2x8x32xf32>,
    } else {
    }
    return
  }
  func.func @transform_0(%arg0: i32, %arg1: i32) -> (i32, i32, i32) {
    %c0_i32 = arith.constant 0 : i32
    %c0_i32_0 = arith.constant 0 : i32
    %c0_i32_1 = arith.constant 0 : i32
    return %arg0, %c0_i32, %c0_i32_0 : i32, i32, i32
  }
  func.func @transform_1(%arg0: i32, %arg1: i32) -> (i32, i32) {
    %c0_i32 = arith.constant 0 : i32
    %c0_i32_0 = arith.constant 0 : i32
    return %arg0, %c0_i32 : i32, i32
  }
  func.func @transform_2(%arg0: i32, %arg1: i32) -> (i32, i32, i32) {
    %c0_i32 = arith.constant 0 : i32
    %c0_i32_0 = arith.constant 0 : i32
    %c0_i32_1 = arith.constant 0 : i32
    return %arg1, %c0_i32, %c0_i32_0 : i32, i32, i32
  }
  func.func @transform_3(%arg0: i32, %arg1: i32) -> (i32, i32, i32) {
    %c0_i32 = arith.constant 0 : i32
    %c0_i32_0 = arith.constant 0 : i32
    %c0_i32_1 = arith.constant 0 : i32
    return %arg1, %c0_i32, %c0_i32_0 : i32, i32, i32
  }
  func.func @transform_4(%arg0: i32, %arg1: i32) -> (i32, i32, i32) {
    %c0_i32 = arith.constant 0 : i32
    %c0_i32_0 = arith.constant 0 : i32
    %c0_i32_1 = arith.constant 0 : i32
    return %arg1, %c0_i32, %c0_i32_0 : i32, i32, i32
  }
  func.func @transform_5(%arg0: i32, %arg1: i32) -> (i32, i32, i32) {
    %c0_i32 = arith.constant 0 : i32
    %c0_i32_0 = arith.constant 0 : i32
    %c0_i32_1 = arith.constant 0 : i32
    return %arg1, %c0_i32, %c0_i32_0 : i32, i32, i32
  }
  func.func @transform_6(%arg0: i32, %arg1: i32) -> (i32, i32, i32) {
    %c0_i32 = arith.constant 0 : i32
    %c0_i32_0 = arith.constant 0 : i32
    %c0_i32_1 = arith.constant 0 : i32
    return %arg1, %c0_i32, %c0_i32_0 : i32, i32, i32
  }
  func.func @transform_7(%arg0: i32, %arg1: i32) -> (i32, i32) {
    %c0_i32 = arith.constant 0 : i32
    %c0_i32_0 = arith.constant 0 : i32
    %c0_i32_1 = arith.constant 0 : i32
    return %c0_i32, %c0_i32_0 : i32, i32
  }
  func.func @transform_8(%arg0: i32, %arg1: i32) -> (i32, i32) {
    %c0_i32 = arith.constant 0 : i32
    %c0_i32_0 = arith.constant 0 : i32
    %c0_i32_1 = arith.constant 0 : i32
    return %c0_i32, %c0_i32_0 : i32, i32
  }
  func.func @transform_9(%arg0: i32, %arg1: i32) -> (i32, i32, i32) {
    %c0_i32 = arith.constant 0 : i32
    %c0_i32_0 = arith.constant 0 : i32
    %c0_i32_1 = arith.constant 0 : i32
    return %arg0, %c0_i32, %c0_i32_0 : i32, i32, i32
  }
}

</mosaic_0001>

<llo_original>
// kernel: tpu_custom_call.1
$region0: #{tpu_custom_call.1}
  #allocation0 [shape = 'u32[]', space=smem, size = 0x4, offset = 0x4, fixed_abs, tag = 'smem constant byte address 0x4 - core index']
  #allocation1 [shape = 'u32[144,128]{1,0:T(1,128)}', space=vmem, size = 0x12000, scoped, tag = 'internal scratch']
  %s0 = inlined_call_operand.vmem [shape: f32[2,8,32], index: 0, kind: input, shape index: {}]
  %s1 = inlined_call_operand.vmem [shape: f32[2,8], index: 1, kind: input, shape index: {}]
  %s2 = inlined_call_operand.vmem [shape: f32[2,32,96], index: 2, kind: input, shape index: {}]
  %s3 = inlined_call_operand.vmem [shape: f32[2,32,32], index: 3, kind: input, shape index: {}]
  %s4 = inlined_call_operand.vmem [shape: f32[2,32,64], index: 4, kind: input, shape index: {}]
  %s5 = inlined_call_operand.vmem [shape: f32[2,64,32], index: 5, kind: input, shape index: {}]
  %s6 = inlined_call_operand.vmem [shape: f32[2,6,64], index: 6, kind: input, shape index: {}]
  %s7 = inlined_call_operand.vmem [shape: f32[1,32], index: 7, kind: input, shape index: {}]
  %s8 = inlined_call_operand.vmem [shape: f32[1,32], index: 8, kind: input, shape index: {}]
  %s9 = inlined_call_operand.hbm [shape: f32[2,8,32], index: 9, kind: output, shape index: {}]
  %s10 = sld [smem:[#allocation0]]
  $region81: #{tpu_custom_call.1} parent=0
    _
  %s12 = ssub.s32 1, %s10
  %s13 = scalar_select 0, %s12, %s10
  $region1: #{tpu_custom_call.1} parent=0
    #allocation2 [shape = 'u8[8192]{0}', space=vmem, size = 0x2000, scoped, tag = 'output window, operand 0, single buffered']
    #allocation3 [shape = 's32[2]{0}', space=sflag, size = 0x8, scoped, tag = 'scoped memory for tpu_custom_call.1']
    %14 = vsyncpa [#allocation3], 0
    loop: start=0, step=1, limit=4
    $region2: #{tpu_custom_call.1} parent=1 // loop_pre_header
      _
    $region3: #{tpu_custom_call.1} parent=1 // loop_header
      %s16 = sphi 0, %s20
      %p17 = scmp.ge.s32.totalorder %s16, 4
      %s23 = sphi 0, %s35
      %s24 = sphi 0, %s31
      %s25 = sphi 0, %s23
      %s26 = sphi 0, %s24
      %s27 = sphi 0, %s25
      %s28 = sphi 0, %s26
      %s38 = sphi 0, %s40
      %s41 = sphi 0, %s38
      %s42 = sphi 0, %s41
      %s58 = sphi 0, %s42
      %s64 = sphi 0, %s66
      %s67 = sphi 0, %s64
      %s68 = sphi 0, %s67
      %s84 = sphi 0, %s68
      %s90 = sphi 0, %s92
      %s93 = sphi 0, %s90
      %s94 = sphi 0, %s93
      %s110 = sphi 0, %s94
      %s116 = sphi 0, %s118
      %s119 = sphi 0, %s116
      %s120 = sphi 0, %s119
      %s136 = sphi 0, %s120
      %s142 = sphi 0, %s144
      %s145 = sphi 0, %s142
      %s146 = sphi 0, %s145
      %s162 = sphi 0, %s146
      %s168 = sphi 0, %s170
      %s171 = sphi 0, %s168
      %s172 = sphi 0, %s171
      %s188 = sphi 0, %s172
      %s194 = sphi 0, %s196
      %s197 = sphi 0, %s194
      %s198 = sphi 0, %s197
      %s214 = sphi 0, %s198
      %s218 = sphi 0, %s218
      %s220 = sphi 0, %s218
      %s221 = sphi 0, %s220
      %s235 = sphi 0, %s221
      %s239 = sphi 0, %s239
      %s241 = sphi 0, %s239
      %s242 = sphi 0, %s241
      %s256 = sphi 0, %s242
      %s262 = sphi 0, %s264
      %s265 = sphi 0, %s262
      %s266 = sphi 0, %s265
      %s282 = sphi 0, %s266
    $region4: #{tpu_custom_call.1} parent=1 // loop_header_branch
      %19 = sbr.rel (%p17) target = $region8
    $region5: #{tpu_custom_call.1} parent=1 // loop_body
      %s21 = ssub.s32 %s16, 1
      %s22 = ssub.s32 %s16, 2
      %s29 = sadd.s32 1, %s24
      %p30 = scmp.ge.s32.totalorder %s29, 2
      %s31 = scalar_select %p30, 0, %s29
      %s32 = sadd.s32 1, %s23
      %s33 = scalar_select %p30, %s32, %s23
      %p34 = scmp.ge.s32.totalorder %s33, 1
      %s35 = scalar_select %p34, 0, %s33
      %s36 = ssub.s32 %s23, %s35
      %p37 = scmp.eq.s32.totalorder %s36, 0
      %s39 = sadd.s32 %s38, 1
      %s40 = scalar_select %p37, %s38, %s39
      %p43 = pneg %p37
      %p44 = scmp.eq.s32.totalorder %s16, 1
      %p45 = por %p43, %p44
      %p46 = scmp.ne.s32.totalorder %s38, %s41
      %p47 = scmp.eq.s32.totalorder %s16, 0
      %p48 = por %p46, %p47
      %p49 = scmp.ne.s32.totalorder %s38, %s41
      %p50 = scmp.eq.s32.totalorder %s21, 1
      %p51 = por %p49, %p50
      %p52 = scmp.ne.s32.totalorder %s41, %s42
      %p53 = scmp.eq.s32.totalorder %s21, 0
      %p54 = por %p52, %p53
      %p55 = scmp.ne.s32.totalorder %s41, %s42
      %p56 = scmp.eq.s32.totalorder %s22, 1
      %p57 = por %p55, %p56
      %p59 = scmp.ne.s32.totalorder %s42, %s58
      %p60 = scmp.eq.s32.totalorder %s22, 0
      %p61 = por %p59, %p60
      %s62 = ssub.s32 %s23, %s35
      %p63 = scmp.eq.s32.totalorder %s62, 0
      %s65 = sadd.s32 %s64, 1
      %s66 = scalar_select %p63, %s64, %s65
      %p69 = pneg %p63
      %p70 = scmp.eq.s32.totalorder %s16, 1
      %p71 = por %p69, %p70
      %p72 = scmp.ne.s32.totalorder %s64, %s67
      %p73 = scmp.eq.s32.totalorder %s16, 0
      %p74 = por %p72, %p73
      %p75 = scmp.ne.s32.totalorder %s64, %s67
      %p76 = scmp.eq.s32.totalorder %s21, 1
      %p77 = por %p75, %p76
      %p78 = scmp.ne.s32.totalorder %s67, %s68
      %p79 = scmp.eq.s32.totalorder %s21, 0
      %p80 = por %p78, %p79
      %p81 = scmp.ne.s32.totalorder %s67, %s68
      %p82 = scmp.eq.s32.totalorder %s22, 1
      %p83 = por %p81, %p82
      %p85 = scmp.ne.s32.totalorder %s68, %s84
      %p86 = scmp.eq.s32.totalorder %s22, 0
      %p87 = por %p85, %p86
      %s88 = ssub.s32 %s24, %s31
      %p89 = scmp.eq.s32.totalorder %s88, 0
      %s91 = sadd.s32 %s90, 1
      %s92 = scalar_select %p89, %s90, %s91
      %p95 = pneg %p89
      %p96 = scmp.eq.s32.totalorder %s16, 1
      %p97 = por %p95, %p96
      %p98 = scmp.ne.s32.totalorder %s90, %s93
      %p99 = scmp.eq.s32.totalorder %s16, 0
      %p100 = por %p98, %p99
      %p101 = scmp.ne.s32.totalorder %s90, %s93
      %p102 = scmp.eq.s32.totalorder %s21, 1
      %p103 = por %p101, %p102
      %p104 = scmp.ne.s32.totalorder %s93, %s94
      %p105 = scmp.eq.s32.totalorder %s21, 0
      %p106 = por %p104, %p105
      %p107 = scmp.ne.s32.totalorder %s93, %s94
      %p108 = scmp.eq.s32.totalorder %s22, 1
      %p109 = por %p107, %p108
      %p111 = scmp.ne.s32.totalorder %s94, %s110
      %p112 = scmp.eq.s32.totalorder %s22, 0
      %p113 = por %p111, %p112
      %s114 = ssub.s32 %s24, %s31
      %p115 = scmp.eq.s32.totalorder %s114, 0
      %s117 = sadd.s32 %s116, 1
      %s118 = scalar_select %p115, %s116, %s117
      %p121 = pneg %p115
      %p122 = scmp.eq.s32.totalorder %s16, 1
      %p123 = por %p121, %p122
      %p124 = scmp.ne.s32.totalorder %s116, %s119
      %p125 = scmp.eq.s32.totalorder %s16, 0
      %p126 = por %p124, %p125
      %p127 = scmp.ne.s32.totalorder %s116, %s119
      %p128 = scmp.eq.s32.totalorder %s21, 1
      %p129 = por %p127, %p128
      %p130 = scmp.ne.s32.totalorder %s119, %s120
      %p131 = scmp.eq.s32.totalorder %s21, 0
      %p132 = por %p130, %p131
      %p133 = scmp.ne.s32.totalorder %s119, %s120
      %p134 = scmp.eq.s32.totalorder %s22, 1
      %p135 = por %p133, %p134
      %p137 = scmp.ne.s32.totalorder %s120, %s136
      %p138 = scmp.eq.s32.totalorder %s22, 0
      %p139 = por %p137, %p138
      %s140 = ssub.s32 %s24, %s31
      %p141 = scmp.eq.s32.totalorder %s140, 0
      %s143 = sadd.s32 %s142, 1
      %s144 = scalar_select %p141, %s142, %s143
      %p147 = pneg %p141
      %p148 = scmp.eq.s32.totalorder %s16, 1
      %p149 = por %p147, %p148
      %p150 = scmp.ne.s32.totalorder %s142, %s145
      %p151 = scmp.eq.s32.totalorder %s16, 0
      %p152 = por %p150, %p151
      %p153 = scmp.ne.s32.totalorder %s142, %s145
      %p154 = scmp.eq.s32.totalorder %s21, 1
      %p155 = por %p153, %p154
      %p156 = scmp.ne.s32.totalorder %s145, %s146
      %p157 = scmp.eq.s32.totalorder %s21, 0
      %p158 = por %p156, %p157
      %p159 = scmp.ne.s32.totalorder %s145, %s146
      %p160 = scmp.eq.s32.totalorder %s22, 1
      %p161 = por %p159, %p160
      %p163 = scmp.ne.s32.totalorder %s146, %s162
      %p164 = scmp.eq.s32.totalorder %s22, 0
      %p165 = por %p163, %p164
      %s166 = ssub.s32 %s24, %s31
      %p167 = scmp.eq.s32.totalorder %s166, 0
      %s169 = sadd.s32 %s168, 1
      %s170 = scalar_select %p167, %s168, %s169
      %p173 = pneg %p167
      %p174 = scmp.eq.s32.totalorder %s16, 1
      %p175 = por %p173, %p174
      %p176 = scmp.ne.s32.totalorder %s168, %s171
      %p177 = scmp.eq.s32.totalorder %s16, 0
      %p178 = por %p176, %p177
      %p179 = scmp.ne.s32.totalorder %s168, %s171
      %p180 = scmp.eq.s32.totalorder %s21, 1
      %p181 = por %p179, %p180
      %p182 = scmp.ne.s32.totalorder %s171, %s172
      %p183 = scmp.eq.s32.totalorder %s21, 0
      %p184 = por %p182, %p183
      %p185 = scmp.ne.s32.totalorder %s171, %s172
      %p186 = scmp.eq.s32.totalorder %s22, 1
      %p187 = por %p185, %p186
      %p189 = scmp.ne.s32.totalorder %s172, %s188
      %p190 = scmp.eq.s32.totalorder %s22, 0
      %p191 = por %p189, %p190
      %s192 = ssub.s32 %s24, %s31
      %p193 = scmp.eq.s32.totalorder %s192, 0
      %s195 = sadd.s32 %s194, 1
      %s196 = scalar_select %p193, %s194, %s195
      %p199 = pneg %p193
      %p200 = scmp.eq.s32.totalorder %s16, 1
      %p201 = por %p199, %p200
      %p202 = scmp.ne.s32.totalorder %s194, %s197
      %p203 = scmp.eq.s32.totalorder %s16, 0
      %p204 = por %p202, %p203
      %p205 = scmp.ne.s32.totalorder %s194, %s197
      %p206 = scmp.eq.s32.totalorder %s21, 1
      %p207 = por %p205, %p206
      %p208 = scmp.ne.s32.totalorder %s197, %s198
      %p209 = scmp.eq.s32.totalorder %s21, 0
      %p210 = por %p208, %p209
      %p211 = scmp.ne.s32.totalorder %s197, %s198
      %p212 = scmp.eq.s32.totalorder %s22, 1
      %p213 = por %p211, %p212
      %p215 = scmp.ne.s32.totalorder %s198, %s214
      %p216 = scmp.eq.s32.totalorder %s22, 0
      %p217 = por %p215, %p216
      %s219 = sadd.s32 %s218, 1
      %p222 = scmp.eq.s32.totalorder %s16, 1
      %p223 = scmp.ne.s32.totalorder %s218, %s220
      %p224 = scmp.eq.s32.totalorder %s16, 0
      %p225 = por %p223, %p224
      %p226 = scmp.ne.s32.totalorder %s218, %s220
      %p227 = scmp.eq.s32.totalorder %s21, 1
      %p228 = por %p226, %p227
      %p229 = scmp.ne.s32.totalorder %s220, %s221
      %p230 = scmp.eq.s32.totalorder %s21, 0
      %p231 = por %p229, %p230
      %p232 = scmp.ne.s32.totalorder %s220, %s221
      %p233 = scmp.eq.s32.totalorder %s22, 1
      %p234 = por %p232, %p233
      %p236 = scmp.ne.s32.totalorder %s221, %s235
      %p237 = scmp.eq.s32.totalorder %s22, 0
      %p238 = por %p236, %p237
      %s240 = sadd.s32 %s239, 1
      %p243 = scmp.eq.s32.totalorder %s16, 1
      %p244 = scmp.ne.s32.totalorder %s239, %s241
      %p245 = scmp.eq.s32.totalorder %s16, 0
      %p246 = por %p244, %p245
      %p247 = scmp.ne.s32.totalorder %s239, %s241
      %p248 = scmp.eq.s32.totalorder %s21, 1
      %p249 = por %p247, %p248
      %p250 = scmp.ne.s32.totalorder %s241, %s242
      %p251 = scmp.eq.s32.totalorder %s21, 0
      %p252 = por %p250, %p251
      %p253 = scmp.ne.s32.totalorder %s241, %s242
      %p254 = scmp.eq.s32.totalorder %s22, 1
      %p255 = por %p253, %p254
      %p257 = scmp.ne.s32.totalorder %s242, %s256
      %p258 = scmp.eq.s32.totalorder %s22, 0
      %p259 = por %p257, %p258
      %s260 = ssub.s32 %s23, %s35
      %p261 = scmp.eq.s32.totalorder %s260, 0
      %s263 = sadd.s32 %s262, 1
      %s264 = scalar_select %p261, %s262, %s263
      %p267 = pneg %p261
      %p268 = scmp.eq.s32.totalorder %s16, 1
      %p269 = por %p267, %p268
      %p270 = scmp.ne.s32.totalorder %s262, %s265
      %p271 = scmp.eq.s32.totalorder %s16, 0
      %p272 = por %p270, %p271
      %p273 = scmp.ne.s32.totalorder %s262, %s265
      %p274 = scmp.eq.s32.totalorder %s21, 1
      %p275 = por %p273, %p274
      %p276 = scmp.ne.s32.totalorder %s265, %s266
      %p277 = scmp.eq.s32.totalorder %s21, 0
      %p278 = por %p276, %p277
      %p279 = scmp.ne.s32.totalorder %s265, %s266
      %p280 = scmp.eq.s32.totalorder %s22, 1
      %p281 = por %p279, %p280
      %p283 = scmp.ne.s32.totalorder %s266, %s282
      %p284 = scmp.eq.s32.totalorder %s22, 0
      %p285 = por %p283, %p284
      %p286 = scmp.le.s32.totalorder 1, %s16
      %p287 = scmp.lt.s32.totalorder %s16, 3
      %p288 = pnand %p286, %p287
      %p289 = pneg %p288
      // Predicated region
      $region9: #{tpu_custom_call.1} parent=5 // pred_check
        _
      $region10: #{tpu_custom_call.1} parent=5 // pred_check_branch
        %291 = sbr.rel (%p288) target = $region12
      $region11: #{tpu_custom_call.1} parent=5 // pred_region
        %s292 = ssub.s32 %s16, 1
        // Predicated region
        $region13: #{tpu_custom_call.1} parent=11 // pred_check
          %p293 = pneg %p54
        $region14: #{tpu_custom_call.1} parent=11 // pred_check_branch
          %295 = sbr.rel (%p293) target = $region16
        $region15: #{tpu_custom_call.1} parent=11 // pred_region
          %s296 = smul.u32 2, %s25
          %p297 = scmp.lt.s32.totalorder %s296, 1
          %s298 = scalar_select %p297, %s296, 1
          %s299 = smul.addr %s298, 8
          %s300 = scalar_lea.vmem %s0, %s299
          %s301 = smul.u32 2, %s25
        $region16: #{tpu_custom_call.1} parent=11 // pred_fallthru
          _
        // Predicated region
        $region17: #{tpu_custom_call.1} parent=11 // pred_check
          %p302 = pneg %p80
        $region18: #{tpu_custom_call.1} parent=11 // pred_check_branch
          %304 = sbr.rel (%p302) target = $region20
        $region19: #{tpu_custom_call.1} parent=11 // pred_region
          %p305 = scmp.lt.s32.totalorder %s25, 0
          %s306 = scalar_select %p305, %s25, 0
          %s307 = smul.addr %s306, 2
          %s308 = scalar_lea.vmem %s1, %s307
        $region20: #{tpu_custom_call.1} parent=11 // pred_fallthru
          _
        // Predicated region
        $region21: #{tpu_custom_call.1} parent=11 // pred_check
          %p309 = pneg %p231
        $region22: #{tpu_custom_call.1} parent=11 // pred_check_branch
          %311 = sbr.rel (%p309) target = $region24
        $region23: #{tpu_custom_call.1} parent=11 // pred_region
          _
        $region24: #{tpu_custom_call.1} parent=11 // pred_fallthru
          _
        // Predicated region
        $region25: #{tpu_custom_call.1} parent=11 // pred_check
          %p312 = pneg %p252
        $region26: #{tpu_custom_call.1} parent=11 // pred_check_branch
          %314 = sbr.rel (%p312) target = $region28
        $region27: #{tpu_custom_call.1} parent=11 // pred_region
          _
        $region28: #{tpu_custom_call.1} parent=11 // pred_fallthru
          _
      $region12: #{tpu_custom_call.1} parent=5 // pred_fallthru
        _
      %p315 = scmp.lt.s32.totalorder %s16, 2
      // Predicated region
      $region29: #{tpu_custom_call.1} parent=5 // pred_check
        %p316 = pneg %p315
      $region30: #{tpu_custom_call.1} parent=5 // pred_check_branch
        %318 = sbr.rel (%p316) target = $region32
      $region31: #{tpu_custom_call.1} parent=5 // pred_region
        // Predicated region
        $region33: #{tpu_custom_call.1} parent=31 // pred_check
          %p319 = pneg %p100
        $region34: #{tpu_custom_call.1} parent=31 // pred_check_branch
          %321 = sbr.rel (%p319) target = $region36
        $region35: #{tpu_custom_call.1} parent=31 // pred_region
          %p322 = scmp.lt.s32.totalorder %s24, 1
          %s323 = scalar_select %p322, %s24, 1
          %s324 = smul.addr %s323, 4
          %s325 = smul.addr %s324, 8
          %s326 = scalar_lea.vmem %s2, %s325
        $region36: #{tpu_custom_call.1} parent=31 // pred_fallthru
          _
        // Predicated region
        $region37: #{tpu_custom_call.1} parent=31 // pred_check
          %p327 = pneg %p126
        $region38: #{tpu_custom_call.1} parent=31 // pred_check_branch
          %329 = sbr.rel (%p327) target = $region40
        $region39: #{tpu_custom_call.1} parent=31 // pred_region
          %p330 = scmp.lt.s32.totalorder %s24, 1
          %s331 = scalar_select %p330, %s24, 1
          %s332 = smul.addr %s331, 4
          %s333 = smul.addr %s332, 8
          %s334 = scalar_lea.vmem %s3, %s333
        $region40: #{tpu_custom_call.1} parent=31 // pred_fallthru
          _
        // Predicated region
        $region41: #{tpu_custom_call.1} parent=31 // pred_check
          %p335 = pneg %p152
        $region42: #{tpu_custom_call.1} parent=31 // pred_check_branch
          %337 = sbr.rel (%p335) target = $region44
        $region43: #{tpu_custom_call.1} parent=31 // pred_region
          %p338 = scmp.lt.s32.totalorder %s24, 1
          %s339 = scalar_select %p338, %s24, 1
          %s340 = smul.addr %s339, 4
          %s341 = smul.addr %s340, 8
          %s342 = scalar_lea.vmem %s4, %s341
        $region44: #{tpu_custom_call.1} parent=31 // pred_fallthru
          _
        // Predicated region
        $region45: #{tpu_custom_call.1} parent=31 // pred_check
          %p343 = pneg %p178
        $region46: #{tpu_custom_call.1} parent=31 // pred_check_branch
          %345 = sbr.rel (%p343) target = $region48
        $region47: #{tpu_custom_call.1} parent=31 // pred_region
          %p346 = scmp.lt.s32.totalorder %s24, 1
          %s347 = scalar_select %p346, %s24, 1
          %s348 = smul.addr %s347, 8
          %s349 = smul.addr %s348, 8
          %s350 = scalar_lea.vmem %s5, %s349
        $region48: #{tpu_custom_call.1} parent=31 // pred_fallthru
          _
        // Predicated region
        $region49: #{tpu_custom_call.1} parent=31 // pred_check
          %p351 = pneg %p204
        $region50: #{tpu_custom_call.1} parent=31 // pred_check_branch
          %353 = sbr.rel (%p351) target = $region52
        $region51: #{tpu_custom_call.1} parent=31 // pred_region
          %p354 = scmp.lt.s32.totalorder %s24, 1
          %s355 = scalar_select %p354, %s24, 1
          %s356 = smul.addr %s355, 8
          %s357 = scalar_lea.vmem %s6, %s356
        $region52: #{tpu_custom_call.1} parent=31 // pred_fallthru
          _
      $region32: #{tpu_custom_call.1} parent=5 // pred_fallthru
        _
      %p358 = scmp.le.s32.totalorder 1, %s16
      %p359 = scmp.lt.s32.totalorder %s16, 3
      %p360 = pnand %p358, %p359
      %p361 = pneg %p360
      // Predicated region
      $region53: #{tpu_custom_call.1} parent=5 // pred_check
        _
      $region54: #{tpu_custom_call.1} parent=5 // pred_check_branch
        %363 = sbr.rel (%p360) target = $region56
      $region55: #{tpu_custom_call.1} parent=5 // pred_region
        %s364 = ssub.s32 %s16, 1
        %s365 = smul.u32 2, %s25
        %p366 = scmp.lt.s32.totalorder %s365, 1
        %s367 = scalar_select %p366, %s365, 1
        %s368 = smul.addr %s367, 8
        %s369 = scalar_lea.vmem %s0, %s368
        %p370 = pneg %p54
        %p371 = pneg %p51
        %p372 = scmp.lt.s32.totalorder %s25, 0
        %s373 = scalar_select %p372, %s25, 0
        %s374 = smul.addr %s373, 2
        %s375 = scalar_lea.vmem %s1, %s374
        %p376 = pneg %p80
        %p377 = pneg %p77
        %p378 = scmp.lt.s32.totalorder %s26, 1
        %s379 = scalar_select %p378, %s26, 1
        %s380 = smul.addr %s379, 4
        %s381 = smul.addr %s380, 8
        %s382 = scalar_lea.vmem %s2, %s381
        %p383 = pneg %p106
        %p384 = pneg %p103
        %p385 = scmp.lt.s32.totalorder %s26, 1
        %s386 = scalar_select %p385, %s26, 1
        %s387 = smul.addr %s386, 4
        %s388 = smul.addr %s387, 8
        %s389 = scalar_lea.vmem %s3, %s388
        %p390 = pneg %p132
        %p391 = pneg %p129
        %p392 = scmp.lt.s32.totalorder %s26, 1
        %s393 = scalar_select %p392, %s26, 1
        %s394 = smul.addr %s393, 4
        %s395 = smul.addr %s394, 8
        %s396 = scalar_lea.vmem %s4, %s395
        %p397 = pneg %p158
        %p398 = pneg %p155
        %p399 = scmp.lt.s32.totalorder %s26, 1
        %s400 = scalar_select %p399, %s26, 1
        %s401 = smul.addr %s400, 8
        %s402 = smul.addr %s401, 8
        %s403 = scalar_lea.vmem %s5, %s402
        %p404 = pneg %p184
        %p405 = pneg %p181
        %p406 = scmp.lt.s32.totalorder %s26, 1
        %s407 = scalar_select %p406, %s26, 1
        %s408 = smul.addr %s407, 8
        %s409 = scalar_lea.vmem %s6, %s408
        %p410 = pneg %p210
        %p411 = pneg %p207
        %p412 = pneg %p231
        %p413 = pneg %p228
        %p414 = pneg %p252
        %p415 = pneg %p249
        %p416 = pneg %p278
        %p417 = pneg %p275
        %s418 = smul.u32 2, %s25
        %p419 = scmp.lt.s32.totalorder %s418, 1
        %s420 = scalar_select %p419, %s418, 1
        %s421 = smul.addr %s420, 8
        %s422 = scalar_lea.vmem %s0, %s421
        %s423 = smul.u32 2, %s25
        %p424 = scmp.lt.s32.totalorder %s25, 0
        %s425 = scalar_select %p424, %s25, 0
        %s426 = smul.addr %s425, 2
        %s427 = scalar_lea.vmem %s1, %s426
        %p428 = scmp.lt.s32.totalorder %s26, 1
        %s429 = scalar_select %p428, %s26, 1
        %s430 = smul.addr %s429, 4
        %s431 = smul.addr %s430, 8
        %s432 = scalar_lea.vmem %s2, %s431
        %p433 = scmp.lt.s32.totalorder %s26, 1
        %s434 = scalar_select %p433, %s26, 1
        %s435 = smul.addr %s434, 4
        %s436 = smul.addr %s435, 8
        %s437 = scalar_lea.vmem %s3, %s436
        %p438 = scmp.lt.s32.totalorder %s26, 1
        %s439 = scalar_select %p438, %s26, 1
        %s440 = smul.addr %s439, 4
        %s441 = smul.addr %s440, 8
        %s442 = scalar_lea.vmem %s4, %s441
        %p443 = scmp.lt.s32.totalorder %s26, 1
        %s444 = scalar_select %p443, %s26, 1
        %s445 = smul.addr %s444, 8
        %s446 = smul.addr %s445, 8
        %s447 = scalar_lea.vmem %s5, %s446
        %p448 = scmp.lt.s32.totalorder %s26, 1
        %s449 = scalar_select %p448, %s26, 1
        %s450 = smul.addr %s449, 8
        %s451 = scalar_lea.vmem %s6, %s450
        %s452 = smul.u32 2, %s25
        %p453 = scmp.eq.s32.totalorder %s26, 0
        // Predicated region
        $region57: #{tpu_custom_call.1} parent=55 // pred_check
          %p454 = pneg %p453
        $region58: #{tpu_custom_call.1} parent=55 // pred_check_branch
          %456 = sbr.rel (%p454) target = $region60
        $region59: #{tpu_custom_call.1} parent=55 // pred_region
          %v457 = vld [vmem:[%s422] sm:$0xff]
          %v458 = vld [vmem:[%s422 + $0x8] sm:$0xff]
          %vm459 = vcmask 261120
          %460 = vst.msk [vmem:[#allocation2] sm:$0xff] %vm459, %v457
          %461 = vst.msk [vmem:[#allocation2 + $0x8] sm:$0xff] %vm459, %v458
        $region60: #{tpu_custom_call.1} parent=55 // pred_fallthru
          _
        %v462 = vld [vmem:[#allocation2] sm:$0xff]
        %v463 = vld [vmem:[#allocation2 + $0x8] sm:$0xff]
        %v464 = vld [vmem:[%s451] sm:$0x3f]
        %v465 = vld [vmem:[%s427] sm:$0x3]
        %vm466 = vcmask 261120
        %v467 = vsel %vm466, %v462, 0.0
        %468 = vadd.xlane.f32.xlu0 %v467
        %v469 = vpop.xlane.xlu0 %468
        %v470 = vsel %vm466, %v463, 0.0
        %471 = vadd.xlane.f32.xlu0 %v470
        %v472 = vpop.xlane.xlu0 %471
        %v473 = vrcp.pop 32.0
        %v474 = vmul.f32 %v469, %v473
        %v475 = vmul.f32 %v472, %v473
        %v476 = vsub.f32 %v462, %v474
        %v477 = vsub.f32 %v463, %v475
        %v478 = vmul.f32 %v476, %v476
        %v479 = vmul.f32 %v477, %v477
        %v480 = vsel %vm466, %v478, 0.0
        %481 = vadd.xlane.f32.xlu0 %v480
        %v482 = vpop.xlane.xlu0 %481
        %v483 = vsel %vm466, %v479, 0.0
        %484 = vadd.xlane.f32.xlu0 %v483
        %v485 = vpop.xlane.xlu0 %484
        %v486 = vmul.f32 %v482, 0.032258064
        %v487 = vmul.f32 %v485, 0.032258064
        %v488 = vrsqrt.pop %v486
        %v489 = vmul.f32 %v486, %v488
        %vm490 = vcmp.eq.f32.partialorder %v486, inf
        %v491 = vsel %vm490, %v486, %v489
        %vm492 = vcmp.eq.f32.partialorder %v486, 0.0
        %v493 = vand.u32 %v486, 2147483648
        %v494 = vsel %vm492, %v493, %v491
        %v495 = vrsqrt.pop %v487
        %v496 = vmul.f32 %v487, %v495
        %vm497 = vcmp.eq.f32.partialorder %v487, inf
        %v498 = vsel %vm497, %v487, %v496
        %vm499 = vcmp.eq.f32.partialorder %v487, 0.0
        %v500 = vand.u32 %v487, 2147483648
        %v501 = vsel %vm499, %v500, %v498
        %v502 = vlaneseq
        %v503 = vshrl.u32 %v502, 7
        %v504 = vsub.s32 0, %v503
        %v505 = vrot.slane %v464, %v504
        %v506 = vmul.f32 %v505, %v476
        %v507 = vmul.f32 %v505, %v477
        %v508 = vadd.f32 %v494, 1e-06
        %v509 = vadd.f32 %v501, 1e-06
        %v510 = vrcp.pop %v508
        %v511 = vmul.f32 %v506, %v510
        %v512 = vrcp.pop %v509
        %v513 = vmul.f32 %v507, %v512
        %v514 = vlaneseq
        %v515 = vshrl.u32 %v514, 7
        %v516 = vsub.s32 1, %v515
        %v517 = vrot.slane %v464, %v516
        %v518 = vadd.f32 %v511, %v517
        %v519 = vadd.f32 %v513, %v517
        %v520 = vld [vmem:[%s432] sm:$0xff]
        %v521 = vld [vmem:[%s432 + $0x8] sm:$0xff]
        %v522 = vld [vmem:[%s432 + $0x10] sm:$0xff]
        %v523 = vld [vmem:[%s432 + $0x18] sm:$0xff]
        %v525 = vsel %vm466, %v518, 0
        %v528 = vsel %vm466, %v519, 0
        %530 = vmatprep.subr.mxu0 0.0
        %531 = vmatpush1.msra.mxu0 0.0
        %532 = vmatprep.subr.mxu0 0.0
        %533 = vmatpush1.msra.mxu0 0.0
        %534 = vmatprep.subr.mxu0 0.0
        %535 = vmatpush1.msra.mxu0 0.0
        %536 = vmatprep.subr.mxu0 0.0
        %537 = vmatpush1.msra.mxu0 0.0
        %538 = vmatprep.subr.mxu0 0.0
        %539 = vmatpush1.msra.mxu0 0.0
        %540 = vmatprep.subr.mxu0 0.0
        %541 = vmatpush1.msra.mxu0 0.0
        %542 = vmatprep.subr.mxu0 0.0
        %543 = vmatpush1.msra.mxu0 0.0
        %544 = vmatprep.subr.mxu0 0.0
        %545 = vmatpush1.msra.mxu0 0.0
        %546 = vmatprep.subr.mxu0 0.0
        %547 = vmatpush1.msra.mxu0 0.0
        %548 = vmatprep.subr.mxu0 0.0
        %549 = vmatpush1.msra.mxu0 0.0
        %550 = vmatprep.subr.mxu0 0.0
        %551 = vmatpush1.msra.mxu0 0.0
        %552 = vmatprep.subr.mxu0 0.0
        %553 = vmatpush1.msra.mxu0 0.0
        %554 = vmatprep.subr.mxu0 0.0
        %555 = vmatpush1.msra.mxu0 %v523
        %556 = vmatprep.subr.mxu0 0.0
        %557 = vmatpush1.msra.mxu0 %v522
        %558 = vmatprep.subr.mxu0 0.0
        %559 = vmatpush1.msra.mxu0 %v521
        %560 = vmatprep.subr.mxu0 0.0
        %561 = vmatpush1.msra.mxu0 %v520
        %562 = vmatprep.subr.mxu0 0.0
        %563 = vmatpush2.msra.mxu0 0.0
        %564 = vmatprep.subr.mxu0 0.0
        %565 = vmatpush2.msra.mxu0 0.0
        %566 = vmatprep.subr.mxu0 0.0
        %567 = vmatpush2.msra.mxu0 0.0
        %568 = vmatprep.subr.mxu0 0.0
        %569 = vmatpush2.msra.mxu0 0.0
        %570 = vmatprep.subr.mxu0 0.0
        %571 = vmatpush2.msra.mxu0 0.0
        %572 = vmatprep.subr.mxu0 0.0
        %573 = vmatpush2.msra.mxu0 0.0
        %574 = vmatprep.subr.mxu0 0.0
        %575 = vmatpush2.msra.mxu0 0.0
        %576 = vmatprep.subr.mxu0 0.0
        %577 = vmatpush2.msra.mxu0 0.0
        %578 = vmatprep.subr.mxu0 0.0
        %579 = vmatpush2.msra.mxu0 0.0
        %580 = vmatprep.subr.mxu0 0.0
        %581 = vmatpush2.msra.mxu0 0.0
        %582 = vmatprep.subr.mxu0 0.0
        %583 = vmatpush2.msra.mxu0 0.0
        %584 = vmatprep.subr.mxu0 0.0
        %585 = vmatpush2.msra.mxu0 0.0
        %586 = vmatprep.subr.mxu0 0.0
        %587 = vmatpush2.msra.mxu0 0.0
        %588 = vmatprep.subr.mxu0 0.0
        %589 = vmatpush2.msra.mxu0 0.0
        %590 = vmatprep.subr.mxu0 0.0
        %591 = vmatpush2.msra.mxu0 0.0
        %592 = vmatprep.subr.mxu0 0.0
        %593 = vmatpush2.msra.mxu0 0.0
        %594 = vmatprep.mubr.f32.mxu0 0.0
        %595 = vmatmul.mubr.f32.gmra.mxu0 %v525
        %v596 = vpop.f32.mrf.mxu0
        %v597 = vadd.f32 0.0, %v596
        %v598 = vpop.f32.mrf.mxu0
        %599 = vmatprep.mubr.f32.mxu0 0.0
        %600 = vmatmul.mubr.f32.gmra.mxu0 %v528
        %v601 = vpop.f32.mrf.mxu0
        %v602 = vadd.f32 0.0, %v601
        %v603 = vpop.f32.mrf.mxu0
        %604 = vdwg.mxu0
        %v605 = vmul.f32 %v597, 0.35355338
        %v606 = vmul.f32 %v602, 0.35355338
        %v607 = vld [vmem:[%s437] sm:$0xff]
        %v608 = vld [vmem:[%s437 + $0x8] sm:$0xff]
        %v609 = vld [vmem:[%s437 + $0x10] sm:$0xff]
        %v610 = vld [vmem:[%s437 + $0x18] sm:$0xff]
        %v613 = vunpack.c.l.s4 1966171168
        %v614 = vunpack.c.0.s8 %v613
        %v615 = vlaneseq
        %v616 = vshrl.u32 %v615, 7
        %v617 = vsub.s32 %v614, %v616
        %v618 = vrot.slane %v465, %v617
        %v619 = vcombine.high %v618, %v618
        %v621 = vunpack.c.l.s4 1966171168
        %v622 = vunpack.c.0.s8 %v621
        %v623 = vlaneseq
        %v624 = vshrl.u32 %v623, 7
        %v625 = vsub.s32 %v622, %v624
        %v626 = vrot.slane %v618, %v625
        %v628 = vunpack.c.l.s4 1966171168
        %v629 = vunpack.c.0.s8 %v628
        %v630 = vlaneseq
        %v631 = vshrl.u32 %v630, 7
        %v632 = vsub.s32 %v629, %v631
        %v633 = vrot.slane %v619, %v632
        %v634 = vlaneseq
        %v635 = vshrl.u32 %v634, 7
        %v636 = vsub.s32 0, %v635
        %v637 = vrot.slane %v626, %v636
        %v638 = vlaneseq
        %v639 = vshrl.u32 %v638, 7
        %v640 = vsub.s32 0, %v639
        %v641 = vrot.slane %v633, %v640
        %645 = vrot.lane.b32.xlu0 %v597, 96
        %v646 = vpop.permute.xlu0 %645
        %vm647 = vcmask 64512
        %v649 = vsel %vm647, %v605, 0
        %v651 = vsel %vm647, %v646, 0
        %653 = vmatprep.subr.mxu0 0.0
        %654 = vmatpush1.xpose.msra.mxu0 0.0
        %655 = vmatprep.subr.mxu0 0.0
        %656 = vmatpush1.xpose.msra.mxu0 0.0
        %657 = vmatprep.subr.mxu0 0.0
        %658 = vmatpush1.xpose.msra.mxu0 0.0
        %659 = vmatprep.subr.mxu0 0.0
        %660 = vmatpush1.xpose.msra.mxu0 0.0
        %661 = vmatprep.subr.mxu0 0.0
        %662 = vmatpush1.xpose.msra.mxu0 0.0
        %663 = vmatprep.subr.mxu0 0.0
        %664 = vmatpush1.xpose.msra.mxu0 0.0
        %665 = vmatprep.subr.mxu0 0.0
        %666 = vmatpush1.xpose.msra.mxu0 0.0
        %667 = vmatprep.subr.mxu0 0.0
        %668 = vmatpush1.xpose.msra.mxu0 0.0
        %669 = vmatprep.subr.mxu0 0.0
        %670 = vmatpush1.xpose.msra.mxu0 0.0
        %671 = vmatprep.subr.mxu0 0.0
        %672 = vmatpush1.xpose.msra.mxu0 0.0
        %673 = vmatprep.subr.mxu0 0.0
        %674 = vmatpush1.xpose.msra.mxu0 0.0
        %675 = vmatprep.subr.mxu0 0.0
        %676 = vmatpush1.xpose.msra.mxu0 0.0
        %677 = vmatprep.subr.mxu0 0.0
        %678 = vmatpush1.xpose.msra.mxu0 0.0
        %679 = vmatprep.subr.mxu0 0.0
        %680 = vmatpush1.xpose.msra.mxu0 0.0
        %681 = vmatprep.subr.mxu0 0.0
        %682 = vmatpush1.xpose.msra.mxu0 0.0
        %683 = vmatprep.subr.mxu0 0.0
        %684 = vmatpush1.xpose.msra.mxu0 %v651
        %685 = vmatprep.subr.mxu0 0.0
        %686 = vmatpush2.xpose.msra.mxu0 0.0
        %687 = vmatprep.subr.mxu0 0.0
        %688 = vmatpush2.xpose.msra.mxu0 0.0
        %689 = vmatprep.subr.mxu0 0.0
        %690 = vmatpush2.xpose.msra.mxu0 0.0
        %691 = vmatprep.subr.mxu0 0.0
        %692 = vmatpush2.xpose.msra.mxu0 0.0
        %693 = vmatprep.subr.mxu0 0.0
        %694 = vmatpush2.xpose.msra.mxu0 0.0
        %695 = vmatprep.subr.mxu0 0.0
        %696 = vmatpush2.xpose.msra.mxu0 0.0
        %697 = vmatprep.subr.mxu0 0.0
        %698 = vmatpush2.xpose.msra.mxu0 0.0
        %699 = vmatprep.subr.mxu0 0.0
        %700 = vmatpush2.xpose.msra.mxu0 0.0
        %701 = vmatprep.subr.mxu0 0.0
        %702 = vmatpush2.xpose.msra.mxu0 0.0
        %703 = vmatprep.subr.mxu0 0.0
        %704 = vmatpush2.xpose.msra.mxu0 0.0
        %705 = vmatprep.subr.mxu0 0.0
        %706 = vmatpush2.xpose.msra.mxu0 0.0
        %707 = vmatprep.subr.mxu0 0.0
        %708 = vmatpush2.xpose.msra.mxu0 0.0
        %709 = vmatprep.subr.mxu0 0.0
        %710 = vmatpush2.xpose.msra.mxu0 0.0
        %711 = vmatprep.subr.mxu0 0.0
        %712 = vmatpush2.xpose.msra.mxu0 0.0
        %713 = vmatprep.subr.mxu0 0.0
        %714 = vmatpush2.xpose.msra.mxu0 0.0
        %715 = vmatprep.subr.mxu0 0.0
        %716 = vmatpush2.xpose.msra.mxu0 0.0
        %717 = vmatprep.mubr.f32.mxu0 0.0
        %718 = vmatmul.mubr.f32.gmra.mxu0 %v649
        %v719 = vpop.f32.mrf.mxu0
        %v720 = vadd.f32 %v637, %v719
        %v721 = vpop.f32.mrf.mxu0
        %722 = vdwg.mxu0
        %724 = vrot.lane.b32.xlu0 %v602, 96
        %v725 = vpop.permute.xlu0 %724
        %v727 = vsel %vm647, %v606, 0
        %v729 = vsel %vm647, %v725, 0
        %731 = vmatprep.subr.mxu0 0.0
        %732 = vmatpush1.xpose.msra.mxu0 0.0
        %733 = vmatprep.subr.mxu0 0.0
        %734 = vmatpush1.xpose.msra.mxu0 0.0
        %735 = vmatprep.subr.mxu0 0.0
        %736 = vmatpush1.xpose.msra.mxu0 0.0
        %737 = vmatprep.subr.mxu0 0.0
        %738 = vmatpush1.xpose.msra.mxu0 0.0
        %739 = vmatprep.subr.mxu0 0.0
        %740 = vmatpush1.xpose.msra.mxu0 0.0
        %741 = vmatprep.subr.mxu0 0.0
        %742 = vmatpush1.xpose.msra.mxu0 0.0
        %743 = vmatprep.subr.mxu0 0.0
        %744 = vmatpush1.xpose.msra.mxu0 0.0
        %745 = vmatprep.subr.mxu0 0.0
        %746 = vmatpush1.xpose.msra.mxu0 0.0
        %747 = vmatprep.subr.mxu0 0.0
        %748 = vmatpush1.xpose.msra.mxu0 0.0
        %749 = vmatprep.subr.mxu0 0.0
        %750 = vmatpush1.xpose.msra.mxu0 0.0
        %751 = vmatprep.subr.mxu0 0.0
        %752 = vmatpush1.xpose.msra.mxu0 0.0
        %753 = vmatprep.subr.mxu0 0.0
        %754 = vmatpush1.xpose.msra.mxu0 0.0
        %755 = vmatprep.subr.mxu0 0.0
        %756 = vmatpush1.xpose.msra.mxu0 0.0
        %757 = vmatprep.subr.mxu0 0.0
        %758 = vmatpush1.xpose.msra.mxu0 0.0
        %759 = vmatprep.subr.mxu0 0.0
        %760 = vmatpush1.xpose.msra.mxu0 0.0
        %761 = vmatprep.subr.mxu0 0.0
        %762 = vmatpush1.xpose.msra.mxu0 %v729
        %763 = vmatprep.subr.mxu0 0.0
        %764 = vmatpush2.xpose.msra.mxu0 0.0
        %765 = vmatprep.subr.mxu0 0.0
        %766 = vmatpush2.xpose.msra.mxu0 0.0
        %767 = vmatprep.subr.mxu0 0.0
        %768 = vmatpush2.xpose.msra.mxu0 0.0
        %769 = vmatprep.subr.mxu0 0.0
        %770 = vmatpush2.xpose.msra.mxu0 0.0
        %771 = vmatprep.subr.mxu0 0.0
        %772 = vmatpush2.xpose.msra.mxu0 0.0
        %773 = vmatprep.subr.mxu0 0.0
        %774 = vmatpush2.xpose.msra.mxu0 0.0
        %775 = vmatprep.subr.mxu0 0.0
        %776 = vmatpush2.xpose.msra.mxu0 0.0
        %777 = vmatprep.subr.mxu0 0.0
        %778 = vmatpush2.xpose.msra.mxu0 0.0
        %779 = vmatprep.subr.mxu0 0.0
        %780 = vmatpush2.xpose.msra.mxu0 0.0
        %781 = vmatprep.subr.mxu0 0.0
        %782 = vmatpush2.xpose.msra.mxu0 0.0
        %783 = vmatprep.subr.mxu0 0.0
        %784 = vmatpush2.xpose.msra.mxu0 0.0
        %785 = vmatprep.subr.mxu0 0.0
        %786 = vmatpush2.xpose.msra.mxu0 0.0
        %787 = vmatprep.subr.mxu0 0.0
        %788 = vmatpush2.xpose.msra.mxu0 0.0
        %789 = vmatprep.subr.mxu0 0.0
        %790 = vmatpush2.xpose.msra.mxu0 0.0
        %791 = vmatprep.subr.mxu0 0.0
        %792 = vmatpush2.xpose.msra.mxu0 0.0
        %793 = vmatprep.subr.mxu0 0.0
        %794 = vmatpush2.xpose.msra.mxu0 0.0
        %795 = vmatprep.mubr.f32.mxu0 0.0
        %796 = vmatmul.mubr.f32.gmra.mxu0 %v727
        %v797 = vpop.f32.mrf.mxu0
        %v798 = vadd.f32 %v641, %v797
        %v799 = vpop.f32.mrf.mxu0
        %800 = vdwg.mxu0
        %v801 = vsel %vm647, %v720, -inf
        %802 = vmax.xlane.f32.xlu0 %v801
        %v803 = vpop.xlane.xlu0 %802
        %v804 = vsel %vm647, %v798, -inf
        %805 = vmax.xlane.f32.xlu0 %v804
        %v806 = vpop.xlane.xlu0 %805
        %v807 = vsub.f32 %v720, %v803
        %v808 = vsub.f32 %v798, %v806
        %v809 = vmul.f32 %v807, 1.442695
        %v810 = vpow.pop %v809
        %v811 = vmul.f32 %v808, 1.442695
        %v812 = vpow.pop %v811
        %v813 = vsel %vm647, %v810, 0.0
        %814 = vadd.xlane.f32.xlu0 %v813
        %v815 = vpop.xlane.xlu0 %814
        %v816 = vsel %vm647, %v812, 0.0
        %817 = vadd.xlane.f32.xlu0 %v816
        %v818 = vpop.xlane.xlu0 %817
        %v819 = vrcp.pop %v815
        %v820 = vmul.f32 %v810, %v819
        %v821 = vrcp.pop %v818
        %v822 = vmul.f32 %v812, %v821
        %823 = vrot.lane.b32.xlu0 %v597, 64
        %v824 = vpop.permute.xlu0 %823
        %v827 = vsel %vm647, %v820, 0
        %829 = vmatprep.subr.mxu0 0.0
        %830 = vmatpush1.msra.mxu0 0.0
        %831 = vmatprep.subr.mxu0 0.0
        %832 = vmatpush1.msra.mxu0 0.0
        %833 = vmatprep.subr.mxu0 0.0
        %834 = vmatpush1.msra.mxu0 0.0
        %835 = vmatprep.subr.mxu0 0.0
        %836 = vmatpush1.msra.mxu0 0.0
        %837 = vmatprep.subr.mxu0 0.0
        %838 = vmatpush1.msra.mxu0 0.0
        %839 = vmatprep.subr.mxu0 0.0
        %840 = vmatpush1.msra.mxu0 0.0
        %841 = vmatprep.subr.mxu0 0.0
        %842 = vmatpush1.msra.mxu0 0.0
        %843 = vmatprep.subr.mxu0 0.0
        %844 = vmatpush1.msra.mxu0 0.0
        %845 = vmatprep.subr.mxu0 0.0
        %846 = vmatpush1.msra.mxu0 0.0
        %847 = vmatprep.subr.mxu0 0.0
        %848 = vmatpush1.msra.mxu0 0.0
        %849 = vmatprep.subr.mxu0 0.0
        %850 = vmatpush1.msra.mxu0 0.0
        %851 = vmatprep.subr.mxu0 0.0
        %852 = vmatpush1.msra.mxu0 0.0
        %853 = vmatprep.subr.mxu0 0.0
        %854 = vmatpush1.msra.mxu0 0.0
        %855 = vmatprep.subr.mxu0 0.0
        %856 = vmatpush1.msra.mxu0 0.0
        %857 = vmatprep.subr.mxu0 0.0
        %858 = vmatpush1.msra.mxu0 0.0
        %859 = vmatprep.subr.mxu0 0.0
        %860 = vmatpush1.msra.mxu0 %v824
        %861 = vmatprep.subr.mxu0 0.0
        %862 = vmatpush2.msra.mxu0 0.0
        %863 = vmatprep.subr.mxu0 0.0
        %864 = vmatpush2.msra.mxu0 0.0
        %865 = vmatprep.subr.mxu0 0.0
        %866 = vmatpush2.msra.mxu0 0.0
        %867 = vmatprep.subr.mxu0 0.0
        %868 = vmatpush2.msra.mxu0 0.0
        %869 = vmatprep.subr.mxu0 0.0
        %870 = vmatpush2.msra.mxu0 0.0
        %871 = vmatprep.subr.mxu0 0.0
        %872 = vmatpush2.msra.mxu0 0.0
        %873 = vmatprep.subr.mxu0 0.0
        %874 = vmatpush2.msra.mxu0 0.0
        %875 = vmatprep.subr.mxu0 0.0
        %876 = vmatpush2.msra.mxu0 0.0
        %877 = vmatprep.subr.mxu0 0.0
        %878 = vmatpush2.msra.mxu0 0.0
        %879 = vmatprep.subr.mxu0 0.0
        %880 = vmatpush2.msra.mxu0 0.0
        %881 = vmatprep.subr.mxu0 0.0
        %882 = vmatpush2.msra.mxu0 0.0
        %883 = vmatprep.subr.mxu0 0.0
        %884 = vmatpush2.msra.mxu0 0.0
        %885 = vmatprep.subr.mxu0 0.0
        %886 = vmatpush2.msra.mxu0 0.0
        %887 = vmatprep.subr.mxu0 0.0
        %888 = vmatpush2.msra.mxu0 0.0
        %889 = vmatprep.subr.mxu0 0.0
        %890 = vmatpush2.msra.mxu0 0.0
        %891 = vmatprep.subr.mxu0 0.0
        %892 = vmatpush2.msra.mxu0 0.0
        %893 = vmatprep.mubr.f32.mxu0 0.0
        %894 = vmatmul.mubr.f32.gmra.mxu0 %v827
        %v895 = vpop.f32.mrf.mxu0
        %v896 = vadd.f32 0.0, %v895
        %v897 = vpop.f32.mrf.mxu0
        %898 = vdwg.mxu0
        %899 = vrot.lane.b32.xlu0 %v602, 64
        %v900 = vpop.permute.xlu0 %899
        %v903 = vsel %vm647, %v822, 0
        %905 = vmatprep.subr.mxu0 0.0
        %906 = vmatpush1.msra.mxu0 0.0
        %907 = vmatprep.subr.mxu0 0.0
        %908 = vmatpush1.msra.mxu0 0.0
        %909 = vmatprep.subr.mxu0 0.0
        %910 = vmatpush1.msra.mxu0 0.0
        %911 = vmatprep.subr.mxu0 0.0
        %912 = vmatpush1.msra.mxu0 0.0
        %913 = vmatprep.subr.mxu0 0.0
        %914 = vmatpush1.msra.mxu0 0.0
        %915 = vmatprep.subr.mxu0 0.0
        %916 = vmatpush1.msra.mxu0 0.0
        %917 = vmatprep.subr.mxu0 0.0
        %918 = vmatpush1.msra.mxu0 0.0
        %919 = vmatprep.subr.mxu0 0.0
        %920 = vmatpush1.msra.mxu0 0.0
        %921 = vmatprep.subr.mxu0 0.0
        %922 = vmatpush1.msra.mxu0 0.0
        %923 = vmatprep.subr.mxu0 0.0
        %924 = vmatpush1.msra.mxu0 0.0
        %925 = vmatprep.subr.mxu0 0.0
        %926 = vmatpush1.msra.mxu0 0.0
        %927 = vmatprep.subr.mxu0 0.0
        %928 = vmatpush1.msra.mxu0 0.0
        %929 = vmatprep.subr.mxu0 0.0
        %930 = vmatpush1.msra.mxu0 0.0
        %931 = vmatprep.subr.mxu0 0.0
        %932 = vmatpush1.msra.mxu0 0.0
        %933 = vmatprep.subr.mxu0 0.0
        %934 = vmatpush1.msra.mxu0 0.0
        %935 = vmatprep.subr.mxu0 0.0
        %936 = vmatpush1.msra.mxu0 %v900
        %937 = vmatprep.subr.mxu0 0.0
        %938 = vmatpush2.msra.mxu0 0.0
        %939 = vmatprep.subr.mxu0 0.0
        %940 = vmatpush2.msra.mxu0 0.0
        %941 = vmatprep.subr.mxu0 0.0
        %942 = vmatpush2.msra.mxu0 0.0
        %943 = vmatprep.subr.mxu0 0.0
        %944 = vmatpush2.msra.mxu0 0.0
        %945 = vmatprep.subr.mxu0 0.0
        %946 = vmatpush2.msra.mxu0 0.0
        %947 = vmatprep.subr.mxu0 0.0
        %948 = vmatpush2.msra.mxu0 0.0
        %949 = vmatprep.subr.mxu0 0.0
        %950 = vmatpush2.msra.mxu0 0.0
        %951 = vmatprep.subr.mxu0 0.0
        %952 = vmatpush2.msra.mxu0 0.0
        %953 = vmatprep.subr.mxu0 0.0
        %954 = vmatpush2.msra.mxu0 0.0
        %955 = vmatprep.subr.mxu0 0.0
        %956 = vmatpush2.msra.mxu0 0.0
        %957 = vmatprep.subr.mxu0 0.0
        %958 = vmatpush2.msra.mxu0 0.0
        %959 = vmatprep.subr.mxu0 0.0
        %960 = vmatpush2.msra.mxu0 0.0
        %961 = vmatprep.subr.mxu0 0.0
        %962 = vmatpush2.msra.mxu0 0.0
        %963 = vmatprep.subr.mxu0 0.0
        %964 = vmatpush2.msra.mxu0 0.0
        %965 = vmatprep.subr.mxu0 0.0
        %966 = vmatpush2.msra.mxu0 0.0
        %967 = vmatprep.subr.mxu0 0.0
        %968 = vmatpush2.msra.mxu0 0.0
        %969 = vmatprep.mubr.f32.mxu0 0.0
        %970 = vmatmul.mubr.f32.gmra.mxu0 %v903
        %v971 = vpop.f32.mrf.mxu0
        %v972 = vadd.f32 0.0, %v971
        %v973 = vpop.f32.mrf.mxu0
        %974 = vdwg.mxu0
        %975 = vrot.lane.b32.xlu0 %v605, 120
        %v976 = vpop.permute.xlu0 %975
        %977 = vrot.lane.b32.xlu0 %v597, 88
        %v978 = vpop.permute.xlu0 %977
        %v979 = vsel %vm647, %v976, 0
        %v981 = vsel %vm647, %v978, 0
        %983 = vmatprep.subr.mxu0 0.0
        %984 = vmatpush1.xpose.msra.mxu0 0.0
        %985 = vmatprep.subr.mxu0 0.0
        %986 = vmatpush1.xpose.msra.mxu0 0.0
        %987 = vmatprep.subr.mxu0 0.0
        %988 = vmatpush1.xpose.msra.mxu0 0.0
        %989 = vmatprep.subr.mxu0 0.0
        %990 = vmatpush1.xpose.msra.mxu0 0.0
        %991 = vmatprep.subr.mxu0 0.0
        %992 = vmatpush1.xpose.msra.mxu0 0.0
        %993 = vmatprep.subr.mxu0 0.0
        %994 = vmatpush1.xpose.msra.mxu0 0.0
        %995 = vmatprep.subr.mxu0 0.0
        %996 = vmatpush1.xpose.msra.mxu0 0.0
        %997 = vmatprep.subr.mxu0 0.0
        %998 = vmatpush1.xpose.msra.mxu0 0.0
        %999 = vmatprep.subr.mxu0 0.0
        %1000 = vmatpush1.xpose.msra.mxu0 0.0
        %1001 = vmatprep.subr.mxu0 0.0
        %1002 = vmatpush1.xpose.msra.mxu0 0.0
        %1003 = vmatprep.subr.mxu0 0.0
        %1004 = vmatpush1.xpose.msra.mxu0 0.0
        %1005 = vmatprep.subr.mxu0 0.0
        %1006 = vmatpush1.xpose.msra.mxu0 0.0
        %1007 = vmatprep.subr.mxu0 0.0
        %1008 = vmatpush1.xpose.msra.mxu0 0.0
        %1009 = vmatprep.subr.mxu0 0.0
        %1010 = vmatpush1.xpose.msra.mxu0 0.0
        %1011 = vmatprep.subr.mxu0 0.0
        %1012 = vmatpush1.xpose.msra.mxu0 0.0
        %1013 = vmatprep.subr.mxu0 0.0
        %1014 = vmatpush1.xpose.msra.mxu0 %v981
        %1015 = vmatprep.subr.mxu0 0.0
        %1016 = vmatpush2.xpose.msra.mxu0 0.0
        %1017 = vmatprep.subr.mxu0 0.0
        %1018 = vmatpush2.xpose.msra.mxu0 0.0
        %1019 = vmatprep.subr.mxu0 0.0
        %1020 = vmatpush2.xpose.msra.mxu0 0.0
        %1021 = vmatprep.subr.mxu0 0.0
        %1022 = vmatpush2.xpose.msra.mxu0 0.0
        %1023 = vmatprep.subr.mxu0 0.0
        %1024 = vmatpush2.xpose.msra.mxu0 0.0
        %1025 = vmatprep.subr.mxu0 0.0
        %1026 = vmatpush2.xpose.msra.mxu0 0.0
        %1027 = vmatprep.subr.mxu0 0.0
        %1028 = vmatpush2.xpose.msra.mxu0 0.0
        %1029 = vmatprep.subr.mxu0 0.0
        %1030 = vmatpush2.xpose.msra.mxu0 0.0
        %1031 = vmatprep.subr.mxu0 0.0
        %1032 = vmatpush2.xpose.msra.mxu0 0.0
        %1033 = vmatprep.subr.mxu0 0.0
        %1034 = vmatpush2.xpose.msra.mxu0 0.0
        %1035 = vmatprep.subr.mxu0 0.0
        %1036 = vmatpush2.xpose.msra.mxu0 0.0
        %1037 = vmatprep.subr.mxu0 0.0
        %1038 = vmatpush2.xpose.msra.mxu0 0.0
        %1039 = vmatprep.subr.mxu0 0.0
        %1040 = vmatpush2.xpose.msra.mxu0 0.0
        %1041 = vmatprep.subr.mxu0 0.0
        %1042 = vmatpush2.xpose.msra.mxu0 0.0
        %1043 = vmatprep.subr.mxu0 0.0
        %1044 = vmatpush2.xpose.msra.mxu0 0.0
        %1045 = vmatprep.subr.mxu0 0.0
        %1046 = vmatpush2.xpose.msra.mxu0 0.0
        %1047 = vmatprep.mubr.f32.mxu0 0.0
        %1048 = vmatmul.mubr.f32.gmra.mxu0 %v979
        %v1049 = vpop.f32.mrf.mxu0
        %v1050 = vadd.f32 %v637, %v1049
        %v1051 = vpop.f32.mrf.mxu0
        %1052 = vdwg.mxu0
        %1053 = vrot.lane.b32.xlu0 %v606, 120
        %v1054 = vpop.permute.xlu0 %1053
        %1055 = vrot.lane.b32.xlu0 %v602, 88
        %v1056 = vpop.permute.xlu0 %1055
        %v1057 = vsel %vm647, %v1054, 0
        %v1059 = vsel %vm647, %v1056, 0
        %1061 = vmatprep.subr.mxu0 0.0
        %1062 = vmatpush1.xpose.msra.mxu0 0.0
        %1063 = vmatprep.subr.mxu0 0.0
        %1064 = vmatpush1.xpose.msra.mxu0 0.0
        %1065 = vmatprep.subr.mxu0 0.0
        %1066 = vmatpush1.xpose.msra.mxu0 0.0
        %1067 = vmatprep.subr.mxu0 0.0
        %1068 = vmatpush1.xpose.msra.mxu0 0.0
        %1069 = vmatprep.subr.mxu0 0.0
        %1070 = vmatpush1.xpose.msra.mxu0 0.0
        %1071 = vmatprep.subr.mxu0 0.0
        %1072 = vmatpush1.xpose.msra.mxu0 0.0
        %1073 = vmatprep.subr.mxu0 0.0
        %1074 = vmatpush1.xpose.msra.mxu0 0.0
        %1075 = vmatprep.subr.mxu0 0.0
        %1076 = vmatpush1.xpose.msra.mxu0 0.0
        %1077 = vmatprep.subr.mxu0 0.0
        %1078 = vmatpush1.xpose.msra.mxu0 0.0
        %1079 = vmatprep.subr.mxu0 0.0
        %1080 = vmatpush1.xpose.msra.mxu0 0.0
        %1081 = vmatprep.subr.mxu0 0.0
        %1082 = vmatpush1.xpose.msra.mxu0 0.0
        %1083 = vmatprep.subr.mxu0 0.0
        %1084 = vmatpush1.xpose.msra.mxu0 0.0
        %1085 = vmatprep.subr.mxu0 0.0
        %1086 = vmatpush1.xpose.msra.mxu0 0.0
        %1087 = vmatprep.subr.mxu0 0.0
        %1088 = vmatpush1.xpose.msra.mxu0 0.0
        %1089 = vmatprep.subr.mxu0 0.0
        %1090 = vmatpush1.xpose.msra.mxu0 0.0
        %1091 = vmatprep.subr.mxu0 0.0
        %1092 = vmatpush1.xpose.msra.mxu0 %v1059
        %1093 = vmatprep.subr.mxu0 0.0
        %1094 = vmatpush2.xpose.msra.mxu0 0.0
        %1095 = vmatprep.subr.mxu0 0.0
        %1096 = vmatpush2.xpose.msra.mxu0 0.0
        %1097 = vmatprep.subr.mxu0 0.0
        %1098 = vmatpush2.xpose.msra.mxu0 0.0
        %1099 = vmatprep.subr.mxu0 0.0
        %1100 = vmatpush2.xpose.msra.mxu0 0.0
        %1101 = vmatprep.subr.mxu0 0.0
        %1102 = vmatpush2.xpose.msra.mxu0 0.0
        %1103 = vmatprep.subr.mxu0 0.0
        %1104 = vmatpush2.xpose.msra.mxu0 0.0
        %1105 = vmatprep.subr.mxu0 0.0
        %1106 = vmatpush2.xpose.msra.mxu0 0.0
        %1107 = vmatprep.subr.mxu0 0.0
        %1108 = vmatpush2.xpose.msra.mxu0 0.0
        %1109 = vmatprep.subr.mxu0 0.0
        %1110 = vmatpush2.xpose.msra.mxu0 0.0
        %1111 = vmatprep.subr.mxu0 0.0
        %1112 = vmatpush2.xpose.msra.mxu0 0.0
        %1113 = vmatprep.subr.mxu0 0.0
        %1114 = vmatpush2.xpose.msra.mxu0 0.0
        %1115 = vmatprep.subr.mxu0 0.0
        %1116 = vmatpush2.xpose.msra.mxu0 0.0
        %1117 = vmatprep.subr.mxu0 0.0
        %1118 = vmatpush2.xpose.msra.mxu0 0.0
        %1119 = vmatprep.subr.mxu0 0.0
        %1120 = vmatpush2.xpose.msra.mxu0 0.0
        %1121 = vmatprep.subr.mxu0 0.0
        %1122 = vmatpush2.xpose.msra.mxu0 0.0
        %1123 = vmatprep.subr.mxu0 0.0
        %1124 = vmatpush2.xpose.msra.mxu0 0.0
        %1125 = vmatprep.mubr.f32.mxu0 0.0
        %1126 = vmatmul.mubr.f32.gmra.mxu0 %v1057
        %v1127 = vpop.f32.mrf.mxu0
        %v1128 = vadd.f32 %v641, %v1127
        %v1129 = vpop.f32.mrf.mxu0
        %1130 = vdwg.mxu0
        %v1131 = vsel %vm647, %v1050, -inf
        %1132 = vmax.xlane.f32.xlu0 %v1131
        %v1133 = vpop.xlane.xlu0 %1132
        %v1134 = vsel %vm647, %v1128, -inf
        %1135 = vmax.xlane.f32.xlu0 %v1134
        %v1136 = vpop.xlane.xlu0 %1135
        %v1137 = vsub.f32 %v1050, %v1133
        %v1138 = vsub.f32 %v1128, %v1136
        %v1139 = vmul.f32 %v1137, 1.442695
        %v1140 = vpow.pop %v1139
        %v1141 = vmul.f32 %v1138, 1.442695
        %v1142 = vpow.pop %v1141
        %v1143 = vsel %vm647, %v1140, 0.0
        %1144 = vadd.xlane.f32.xlu0 %v1143
        %v1145 = vpop.xlane.xlu0 %1144
        %v1146 = vsel %vm647, %v1142, 0.0
        %1147 = vadd.xlane.f32.xlu0 %v1146
        %v1148 = vpop.xlane.xlu0 %1147
        %v1149 = vrcp.pop %v1145
        %v1150 = vmul.f32 %v1140, %v1149
        %v1151 = vrcp.pop %v1148
        %v1152 = vmul.f32 %v1142, %v1151
        %1153 = vrot.lane.b32.xlu0 %v597, 56
        %v1154 = vpop.permute.xlu0 %1153
        %v1157 = vsel %vm647, %v1150, 0
        %1159 = vmatprep.subr.mxu0 0.0
        %1160 = vmatpush1.msra.mxu0 0.0
        %1161 = vmatprep.subr.mxu0 0.0
        %1162 = vmatpush1.msra.mxu0 0.0
        %1163 = vmatprep.subr.mxu0 0.0
        %1164 = vmatpush1.msra.mxu0 0.0
        %1165 = vmatprep.subr.mxu0 0.0
        %1166 = vmatpush1.msra.mxu0 0.0
        %1167 = vmatprep.subr.mxu0 0.0
        %1168 = vmatpush1.msra.mxu0 0.0
        %1169 = vmatprep.subr.mxu0 0.0
        %1170 = vmatpush1.msra.mxu0 0.0
        %1171 = vmatprep.subr.mxu0 0.0
        %1172 = vmatpush1.msra.mxu0 0.0
        %1173 = vmatprep.subr.mxu0 0.0
        %1174 = vmatpush1.msra.mxu0 0.0
        %1175 = vmatprep.subr.mxu0 0.0
        %1176 = vmatpush1.msra.mxu0 0.0
        %1177 = vmatprep.subr.mxu0 0.0
        %1178 = vmatpush1.msra.mxu0 0.0
        %1179 = vmatprep.subr.mxu0 0.0
        %1180 = vmatpush1.msra.mxu0 0.0
        %1181 = vmatprep.subr.mxu0 0.0
        %1182 = vmatpush1.msra.mxu0 0.0
        %1183 = vmatprep.subr.mxu0 0.0
        %1184 = vmatpush1.msra.mxu0 0.0
        %1185 = vmatprep.subr.mxu0 0.0
        %1186 = vmatpush1.msra.mxu0 0.0
        %1187 = vmatprep.subr.mxu0 0.0
        %1188 = vmatpush1.msra.mxu0 0.0
        %1189 = vmatprep.subr.mxu0 0.0
        %1190 = vmatpush1.msra.mxu0 %v1154
        %1191 = vmatprep.subr.mxu0 0.0
        %1192 = vmatpush2.msra.mxu0 0.0
        %1193 = vmatprep.subr.mxu0 0.0
        %1194 = vmatpush2.msra.mxu0 0.0
        %1195 = vmatprep.subr.mxu0 0.0
        %1196 = vmatpush2.msra.mxu0 0.0
        %1197 = vmatprep.subr.mxu0 0.0
        %1198 = vmatpush2.msra.mxu0 0.0
        %1199 = vmatprep.subr.mxu0 0.0
        %1200 = vmatpush2.msra.mxu0 0.0
        %1201 = vmatprep.subr.mxu0 0.0
        %1202 = vmatpush2.msra.mxu0 0.0
        %1203 = vmatprep.subr.mxu0 0.0
        %1204 = vmatpush2.msra.mxu0 0.0
        %1205 = vmatprep.subr.mxu0 0.0
        %1206 = vmatpush2.msra.mxu0 0.0
        %1207 = vmatprep.subr.mxu0 0.0
        %1208 = vmatpush2.msra.mxu0 0.0
        %1209 = vmatprep.subr.mxu0 0.0
        %1210 = vmatpush2.msra.mxu0 0.0
        %1211 = vmatprep.subr.mxu0 0.0
        %1212 = vmatpush2.msra.mxu0 0.0
        %1213 = vmatprep.subr.mxu0 0.0
        %1214 = vmatpush2.msra.mxu0 0.0
        %1215 = vmatprep.subr.mxu0 0.0
        %1216 = vmatpush2.msra.mxu0 0.0
        %1217 = vmatprep.subr.mxu0 0.0
        %1218 = vmatpush2.msra.mxu0 0.0
        %1219 = vmatprep.subr.mxu0 0.0
        %1220 = vmatpush2.msra.mxu0 0.0
        %1221 = vmatprep.subr.mxu0 0.0
        %1222 = vmatpush2.msra.mxu0 0.0
        %1223 = vmatprep.mubr.f32.mxu0 0.0
        %1224 = vmatmul.mubr.f32.gmra.mxu0 %v1157
        %v1225 = vpop.f32.mrf.mxu0
        %v1226 = vadd.f32 0.0, %v1225
        %v1227 = vpop.f32.mrf.mxu0
        %1228 = vdwg.mxu0
        %1229 = vrot.lane.b32.xlu0 %v602, 56
        %v1230 = vpop.permute.xlu0 %1229
        %v1233 = vsel %vm647, %v1152, 0
        %1235 = vmatprep.subr.mxu0 0.0
        %1236 = vmatpush1.msra.mxu0 0.0
        %1237 = vmatprep.subr.mxu0 0.0
        %1238 = vmatpush1.msra.mxu0 0.0
        %1239 = vmatprep.subr.mxu0 0.0
        %1240 = vmatpush1.msra.mxu0 0.0
        %1241 = vmatprep.subr.mxu0 0.0
        %1242 = vmatpush1.msra.mxu0 0.0
        %1243 = vmatprep.subr.mxu0 0.0
        %1244 = vmatpush1.msra.mxu0 0.0
        %1245 = vmatprep.subr.mxu0 0.0
        %1246 = vmatpush1.msra.mxu0 0.0
        %1247 = vmatprep.subr.mxu0 0.0
        %1248 = vmatpush1.msra.mxu0 0.0
        %1249 = vmatprep.subr.mxu0 0.0
        %1250 = vmatpush1.msra.mxu0 0.0
        %1251 = vmatprep.subr.mxu0 0.0
        %1252 = vmatpush1.msra.mxu0 0.0
        %1253 = vmatprep.subr.mxu0 0.0
        %1254 = vmatpush1.msra.mxu0 0.0
        %1255 = vmatprep.subr.mxu0 0.0
        %1256 = vmatpush1.msra.mxu0 0.0
        %1257 = vmatprep.subr.mxu0 0.0
        %1258 = vmatpush1.msra.mxu0 0.0
        %1259 = vmatprep.subr.mxu0 0.0
        %1260 = vmatpush1.msra.mxu0 0.0
        %1261 = vmatprep.subr.mxu0 0.0
        %1262 = vmatpush1.msra.mxu0 0.0
        %1263 = vmatprep.subr.mxu0 0.0
        %1264 = vmatpush1.msra.mxu0 0.0
        %1265 = vmatprep.subr.mxu0 0.0
        %1266 = vmatpush1.msra.mxu0 %v1230
        %1267 = vmatprep.subr.mxu0 0.0
        %1268 = vmatpush2.msra.mxu0 0.0
        %1269 = vmatprep.subr.mxu0 0.0
        %1270 = vmatpush2.msra.mxu0 0.0
        %1271 = vmatprep.subr.mxu0 0.0
        %1272 = vmatpush2.msra.mxu0 0.0
        %1273 = vmatprep.subr.mxu0 0.0
        %1274 = vmatpush2.msra.mxu0 0.0
        %1275 = vmatprep.subr.mxu0 0.0
        %1276 = vmatpush2.msra.mxu0 0.0
        %1277 = vmatprep.subr.mxu0 0.0
        %1278 = vmatpush2.msra.mxu0 0.0
        %1279 = vmatprep.subr.mxu0 0.0
        %1280 = vmatpush2.msra.mxu0 0.0
        %1281 = vmatprep.subr.mxu0 0.0
        %1282 = vmatpush2.msra.mxu0 0.0
        %1283 = vmatprep.subr.mxu0 0.0
        %1284 = vmatpush2.msra.mxu0 0.0
        %1285 = vmatprep.subr.mxu0 0.0
        %1286 = vmatpush2.msra.mxu0 0.0
        %1287 = vmatprep.subr.mxu0 0.0
        %1288 = vmatpush2.msra.mxu0 0.0
        %1289 = vmatprep.subr.mxu0 0.0
        %1290 = vmatpush2.msra.mxu0 0.0
        %1291 = vmatprep.subr.mxu0 0.0
        %1292 = vmatpush2.msra.mxu0 0.0
        %1293 = vmatprep.subr.mxu0 0.0
        %1294 = vmatpush2.msra.mxu0 0.0
        %1295 = vmatprep.subr.mxu0 0.0
        %1296 = vmatpush2.msra.mxu0 0.0
        %1297 = vmatprep.subr.mxu0 0.0
        %1298 = vmatpush2.msra.mxu0 0.0
        %1299 = vmatprep.mubr.f32.mxu0 0.0
        %1300 = vmatmul.mubr.f32.gmra.mxu0 %v1233
        %v1301 = vpop.f32.mrf.mxu0
        %v1302 = vadd.f32 0.0, %v1301
        %v1303 = vpop.f32.mrf.mxu0
        %1304 = vdwg.mxu0
        %v1306 = vsel %vm647, %v1226, 0
        %v1309 = vsel %vm647, %v1302, 0
        %1311 = vmatprep.subr.mxu0 0.0
        %1312 = vmatpush1.msra.mxu0 0.0
        %1313 = vmatprep.subr.mxu0 0.0
        %1314 = vmatpush1.msra.mxu0 0.0
        %1315 = vmatprep.subr.mxu0 0.0
        %1316 = vmatpush1.msra.mxu0 0.0
        %1317 = vmatprep.subr.mxu0 0.0
        %1318 = vmatpush1.msra.mxu0 0.0
        %1319 = vmatprep.subr.mxu0 0.0
        %1320 = vmatpush1.msra.mxu0 0.0
        %1321 = vmatprep.subr.mxu0 0.0
        %1322 = vmatpush1.msra.mxu0 0.0
        %1323 = vmatprep.subr.mxu0 0.0
        %1324 = vmatpush1.msra.mxu0 0.0
        %1325 = vmatprep.subr.mxu0 0.0
        %1326 = vmatpush1.msra.mxu0 0.0
        %1327 = vmatprep.subr.mxu0 0.0
        %1328 = vmatpush1.msra.mxu0 0.0
        %1329 = vmatprep.subr.mxu0 0.0
        %1330 = vmatpush1.msra.mxu0 0.0
        %1331 = vmatprep.subr.mxu0 0.0
        %1332 = vmatpush1.msra.mxu0 0.0
        %1333 = vmatprep.subr.mxu0 0.0
        %1334 = vmatpush1.msra.mxu0 0.0
        %1335 = vmatprep.subr.mxu0 0.0
        %1336 = vmatpush1.msra.mxu0 0.0
        %1337 = vmatprep.subr.mxu0 0.0
        %1338 = vmatpush1.msra.mxu0 0.0
        %1339 = vmatprep.subr.mxu0 0.0
        %1340 = vmatpush1.msra.mxu0 0.0
        %1341 = vmatprep.subr.mxu0 0.0
        %1342 = vmatpush1.msra.mxu0 %v608
        %1343 = vmatprep.subr.mxu0 0.0
        %1344 = vmatpush2.msra.mxu0 0.0
        %1345 = vmatprep.subr.mxu0 0.0
        %1346 = vmatpush2.msra.mxu0 0.0
        %1347 = vmatprep.subr.mxu0 0.0
        %1348 = vmatpush2.msra.mxu0 0.0
        %1349 = vmatprep.subr.mxu0 0.0
        %1350 = vmatpush2.msra.mxu0 0.0
        %1351 = vmatprep.subr.mxu0 0.0
        %1352 = vmatpush2.msra.mxu0 0.0
        %1353 = vmatprep.subr.mxu0 0.0
        %1354 = vmatpush2.msra.mxu0 0.0
        %1355 = vmatprep.subr.mxu0 0.0
        %1356 = vmatpush2.msra.mxu0 0.0
        %1357 = vmatprep.subr.mxu0 0.0
        %1358 = vmatpush2.msra.mxu0 0.0
        %1359 = vmatprep.subr.mxu0 0.0
        %1360 = vmatpush2.msra.mxu0 0.0
        %1361 = vmatprep.subr.mxu0 0.0
        %1362 = vmatpush2.msra.mxu0 0.0
        %1363 = vmatprep.subr.mxu0 0.0
        %1364 = vmatpush2.msra.mxu0 0.0
        %1365 = vmatprep.subr.mxu0 0.0
        %1366 = vmatpush2.msra.mxu0 0.0
        %1367 = vmatprep.subr.mxu0 0.0
        %1368 = vmatpush2.msra.mxu0 0.0
        %1369 = vmatprep.subr.mxu0 0.0
        %1370 = vmatpush2.msra.mxu0 0.0
        %1371 = vmatprep.subr.mxu0 0.0
        %1372 = vmatpush2.msra.mxu0 0.0
        %1373 = vmatprep.subr.mxu0 0.0
        %1374 = vmatpush2.msra.mxu0 0.0
        %1375 = vmatprep.mubr.f32.mxu0 0.0
        %1376 = vmatmul.mubr.f32.gmra.mxu0 %v1306
        %v1377 = vpop.f32.mrf.mxu0
        %v1378 = vadd.f32 0.0, %v1377
        %v1379 = vpop.f32.mrf.mxu0
        %1380 = vmatprep.mubr.f32.mxu0 0.0
        %1381 = vmatmul.mubr.f32.gmra.mxu0 %v1309
        %v1382 = vpop.f32.mrf.mxu0
        %v1383 = vadd.f32 0.0, %v1382
        %v1384 = vpop.f32.mrf.mxu0
        %1385 = vdwg.mxu0
        %v1387 = vsel %vm647, %v896, 0
        %v1390 = vsel %vm647, %v972, 0
        %1392 = vmatprep.subr.mxu0 0.0
        %1393 = vmatpush1.msra.mxu0 0.0
        %1394 = vmatprep.subr.mxu0 0.0
        %1395 = vmatpush1.msra.mxu0 0.0
        %1396 = vmatprep.subr.mxu0 0.0
        %1397 = vmatpush1.msra.mxu0 0.0
        %1398 = vmatprep.subr.mxu0 0.0
        %1399 = vmatpush1.msra.mxu0 0.0
        %1400 = vmatprep.subr.mxu0 0.0
        %1401 = vmatpush1.msra.mxu0 0.0
        %1402 = vmatprep.subr.mxu0 0.0
        %1403 = vmatpush1.msra.mxu0 0.0
        %1404 = vmatprep.subr.mxu0 0.0
        %1405 = vmatpush1.msra.mxu0 0.0
        %1406 = vmatprep.subr.mxu0 0.0
        %1407 = vmatpush1.msra.mxu0 0.0
        %1408 = vmatprep.subr.mxu0 0.0
        %1409 = vmatpush1.msra.mxu0 0.0
        %1410 = vmatprep.subr.mxu0 0.0
        %1411 = vmatpush1.msra.mxu0 0.0
        %1412 = vmatprep.subr.mxu0 0.0
        %1413 = vmatpush1.msra.mxu0 0.0
        %1414 = vmatprep.subr.mxu0 0.0
        %1415 = vmatpush1.msra.mxu0 0.0
        %1416 = vmatprep.subr.mxu0 0.0
        %1417 = vmatpush1.msra.mxu0 0.0
        %1418 = vmatprep.subr.mxu0 0.0
        %1419 = vmatpush1.msra.mxu0 0.0
        %1420 = vmatprep.subr.mxu0 0.0
        %1421 = vmatpush1.msra.mxu0 0.0
        %1422 = vmatprep.subr.mxu0 0.0
        %1423 = vmatpush1.msra.mxu0 %v607
        %1424 = vmatprep.subr.mxu0 0.0
        %1425 = vmatpush2.msra.mxu0 0.0
        %1426 = vmatprep.subr.mxu0 0.0
        %1427 = vmatpush2.msra.mxu0 0.0
        %1428 = vmatprep.subr.mxu0 0.0
        %1429 = vmatpush2.msra.mxu0 0.0
        %1430 = vmatprep.subr.mxu0 0.0
        %1431 = vmatpush2.msra.mxu0 0.0
        %1432 = vmatprep.subr.mxu0 0.0
        %1433 = vmatpush2.msra.mxu0 0.0
        %1434 = vmatprep.subr.mxu0 0.0
        %1435 = vmatpush2.msra.mxu0 0.0
        %1436 = vmatprep.subr.mxu0 0.0
        %1437 = vmatpush2.msra.mxu0 0.0
        %1438 = vmatprep.subr.mxu0 0.0
        %1439 = vmatpush2.msra.mxu0 0.0
        %1440 = vmatprep.subr.mxu0 0.0
        %1441 = vmatpush2.msra.mxu0 0.0
        %1442 = vmatprep.subr.mxu0 0.0
        %1443 = vmatpush2.msra.mxu0 0.0
        %1444 = vmatprep.subr.mxu0 0.0
        %1445 = vmatpush2.msra.mxu0 0.0
        %1446 = vmatprep.subr.mxu0 0.0
        %1447 = vmatpush2.msra.mxu0 0.0
        %1448 = vmatprep.subr.mxu0 0.0
        %1449 = vmatpush2.msra.mxu0 0.0
        %1450 = vmatprep.subr.mxu0 0.0
        %1451 = vmatpush2.msra.mxu0 0.0
        %1452 = vmatprep.subr.mxu0 0.0
        %1453 = vmatpush2.msra.mxu0 0.0
        %1454 = vmatprep.subr.mxu0 0.0
        %1455 = vmatpush2.msra.mxu0 0.0
        %1456 = vmatprep.mubr.f32.mxu0 0.0
        %1457 = vmatmul.mubr.f32.gmra.mxu0 %v1387
        %v1458 = vpop.f32.mrf.mxu0
        %v1459 = vadd.f32 %v1378, %v1458
        %v1460 = vpop.f32.mrf.mxu0
        %1461 = vmatprep.mubr.f32.mxu0 0.0
        %1462 = vmatmul.mubr.f32.gmra.mxu0 %v1390
        %v1463 = vpop.f32.mrf.mxu0
        %v1464 = vadd.f32 %v1383, %v1463
        %v1465 = vpop.f32.mrf.mxu0
        %1466 = vdwg.mxu0
        %1467 = vrot.lane.b32.xlu0 %v605, 112
        %v1468 = vpop.permute.xlu0 %1467
        %1469 = vrot.lane.b32.xlu0 %v597, 80
        %v1470 = vpop.permute.xlu0 %1469
        %v1471 = vsel %vm647, %v1468, 0
        %v1473 = vsel %vm647, %v1470, 0
        %1475 = vmatprep.subr.mxu0 0.0
        %1476 = vmatpush1.xpose.msra.mxu0 0.0
        %1477 = vmatprep.subr.mxu0 0.0
        %1478 = vmatpush1.xpose.msra.mxu0 0.0
        %1479 = vmatprep.subr.mxu0 0.0
        %1480 = vmatpush1.xpose.msra.mxu0 0.0
        %1481 = vmatprep.subr.mxu0 0.0
        %1482 = vmatpush1.xpose.msra.mxu0 0.0
        %1483 = vmatprep.subr.mxu0 0.0
        %1484 = vmatpush1.xpose.msra.mxu0 0.0
        %1485 = vmatprep.subr.mxu0 0.0
        %1486 = vmatpush1.xpose.msra.mxu0 0.0
        %1487 = vmatprep.subr.mxu0 0.0
        %1488 = vmatpush1.xpose.msra.mxu0 0.0
        %1489 = vmatprep.subr.mxu0 0.0
        %1490 = vmatpush1.xpose.msra.mxu0 0.0
        %1491 = vmatprep.subr.mxu0 0.0
        %1492 = vmatpush1.xpose.msra.mxu0 0.0
        %1493 = vmatprep.subr.mxu0 0.0
        %1494 = vmatpush1.xpose.msra.mxu0 0.0
        %1495 = vmatprep.subr.mxu0 0.0
        %1496 = vmatpush1.xpose.msra.mxu0 0.0
        %1497 = vmatprep.subr.mxu0 0.0
        %1498 = vmatpush1.xpose.msra.mxu0 0.0
        %1499 = vmatprep.subr.mxu0 0.0
        %1500 = vmatpush1.xpose.msra.mxu0 0.0
        %1501 = vmatprep.subr.mxu0 0.0
        %1502 = vmatpush1.xpose.msra.mxu0 0.0
        %1503 = vmatprep.subr.mxu0 0.0
        %1504 = vmatpush1.xpose.msra.mxu0 0.0
        %1505 = vmatprep.subr.mxu0 0.0
        %1506 = vmatpush1.xpose.msra.mxu0 %v1473
        %1507 = vmatprep.subr.mxu0 0.0
        %1508 = vmatpush2.xpose.msra.mxu0 0.0
        %1509 = vmatprep.subr.mxu0 0.0
        %1510 = vmatpush2.xpose.msra.mxu0 0.0
        %1511 = vmatprep.subr.mxu0 0.0
        %1512 = vmatpush2.xpose.msra.mxu0 0.0
        %1513 = vmatprep.subr.mxu0 0.0
        %1514 = vmatpush2.xpose.msra.mxu0 0.0
        %1515 = vmatprep.subr.mxu0 0.0
        %1516 = vmatpush2.xpose.msra.mxu0 0.0
        %1517 = vmatprep.subr.mxu0 0.0
        %1518 = vmatpush2.xpose.msra.mxu0 0.0
        %1519 = vmatprep.subr.mxu0 0.0
        %1520 = vmatpush2.xpose.msra.mxu0 0.0
        %1521 = vmatprep.subr.mxu0 0.0
        %1522 = vmatpush2.xpose.msra.mxu0 0.0
        %1523 = vmatprep.subr.mxu0 0.0
        %1524 = vmatpush2.xpose.msra.mxu0 0.0
        %1525 = vmatprep.subr.mxu0 0.0
        %1526 = vmatpush2.xpose.msra.mxu0 0.0
        %1527 = vmatprep.subr.mxu0 0.0
        %1528 = vmatpush2.xpose.msra.mxu0 0.0
        %1529 = vmatprep.subr.mxu0 0.0
        %1530 = vmatpush2.xpose.msra.mxu0 0.0
        %1531 = vmatprep.subr.mxu0 0.0
        %1532 = vmatpush2.xpose.msra.mxu0 0.0
        %1533 = vmatprep.subr.mxu0 0.0
        %1534 = vmatpush2.xpose.msra.mxu0 0.0
        %1535 = vmatprep.subr.mxu0 0.0
        %1536 = vmatpush2.xpose.msra.mxu0 0.0
        %1537 = vmatprep.subr.mxu0 0.0
        %1538 = vmatpush2.xpose.msra.mxu0 0.0
        %1539 = vmatprep.mubr.f32.mxu0 0.0
        %1540 = vmatmul.mubr.f32.gmra.mxu0 %v1471
        %v1541 = vpop.f32.mrf.mxu0
        %v1542 = vadd.f32 %v637, %v1541
        %v1543 = vpop.f32.mrf.mxu0
        %1544 = vdwg.mxu0
        %1545 = vrot.lane.b32.xlu0 %v606, 112
        %v1546 = vpop.permute.xlu0 %1545
        %1547 = vrot.lane.b32.xlu0 %v602, 80
        %v1548 = vpop.permute.xlu0 %1547
        %v1549 = vsel %vm647, %v1546, 0
        %v1551 = vsel %vm647, %v1548, 0
        %1553 = vmatprep.subr.mxu0 0.0
        %1554 = vmatpush1.xpose.msra.mxu0 0.0
        %1555 = vmatprep.subr.mxu0 0.0
        %1556 = vmatpush1.xpose.msra.mxu0 0.0
        %1557 = vmatprep.subr.mxu0 0.0
        %1558 = vmatpush1.xpose.msra.mxu0 0.0
        %1559 = vmatprep.subr.mxu0 0.0
        %1560 = vmatpush1.xpose.msra.mxu0 0.0
        %1561 = vmatprep.subr.mxu0 0.0
        %1562 = vmatpush1.xpose.msra.mxu0 0.0
        %1563 = vmatprep.subr.mxu0 0.0
        %1564 = vmatpush1.xpose.msra.mxu0 0.0
        %1565 = vmatprep.subr.mxu0 0.0
        %1566 = vmatpush1.xpose.msra.mxu0 0.0
        %1567 = vmatprep.subr.mxu0 0.0
        %1568 = vmatpush1.xpose.msra.mxu0 0.0
        %1569 = vmatprep.subr.mxu0 0.0
        %1570 = vmatpush1.xpose.msra.mxu0 0.0
        %1571 = vmatprep.subr.mxu0 0.0
        %1572 = vmatpush1.xpose.msra.mxu0 0.0
        %1573 = vmatprep.subr.mxu0 0.0
        %1574 = vmatpush1.xpose.msra.mxu0 0.0
        %1575 = vmatprep.subr.mxu0 0.0
        %1576 = vmatpush1.xpose.msra.mxu0 0.0
        %1577 = vmatprep.subr.mxu0 0.0
        %1578 = vmatpush1.xpose.msra.mxu0 0.0
        %1579 = vmatprep.subr.mxu0 0.0
        %1580 = vmatpush1.xpose.msra.mxu0 0.0
        %1581 = vmatprep.subr.mxu0 0.0
        %1582 = vmatpush1.xpose.msra.mxu0 0.0
        %1583 = vmatprep.subr.mxu0 0.0
        %1584 = vmatpush1.xpose.msra.mxu0 %v1551
        %1585 = vmatprep.subr.mxu0 0.0
        %1586 = vmatpush2.xpose.msra.mxu0 0.0
        %1587 = vmatprep.subr.mxu0 0.0
        %1588 = vmatpush2.xpose.msra.mxu0 0.0
        %1589 = vmatprep.subr.mxu0 0.0
        %1590 = vmatpush2.xpose.msra.mxu0 0.0
        %1591 = vmatprep.subr.mxu0 0.0
        %1592 = vmatpush2.xpose.msra.mxu0 0.0
        %1593 = vmatprep.subr.mxu0 0.0
        %1594 = vmatpush2.xpose.msra.mxu0 0.0
        %1595 = vmatprep.subr.mxu0 0.0
        %1596 = vmatpush2.xpose.msra.mxu0 0.0
        %1597 = vmatprep.subr.mxu0 0.0
        %1598 = vmatpush2.xpose.msra.mxu0 0.0
        %1599 = vmatprep.subr.mxu0 0.0
        %1600 = vmatpush2.xpose.msra.mxu0 0.0
        %1601 = vmatprep.subr.mxu0 0.0
        %1602 = vmatpush2.xpose.msra.mxu0 0.0
        %1603 = vmatprep.subr.mxu0 0.0
        %1604 = vmatpush2.xpose.msra.mxu0 0.0
        %1605 = vmatprep.subr.mxu0 0.0
        %1606 = vmatpush2.xpose.msra.mxu0 0.0
        %1607 = vmatprep.subr.mxu0 0.0
        %1608 = vmatpush2.xpose.msra.mxu0 0.0
        %1609 = vmatprep.subr.mxu0 0.0
        %1610 = vmatpush2.xpose.msra.mxu0 0.0
        %1611 = vmatprep.subr.mxu0 0.0
        %1612 = vmatpush2.xpose.msra.mxu0 0.0
        %1613 = vmatprep.subr.mxu0 0.0
        %1614 = vmatpush2.xpose.msra.mxu0 0.0
        %1615 = vmatprep.subr.mxu0 0.0
        %1616 = vmatpush2.xpose.msra.mxu0 0.0
        %1617 = vmatprep.mubr.f32.mxu0 0.0
        %1618 = vmatmul.mubr.f32.gmra.mxu0 %v1549
        %v1619 = vpop.f32.mrf.mxu0
        %v1620 = vadd.f32 %v641, %v1619
        %v1621 = vpop.f32.mrf.mxu0
        %1622 = vdwg.mxu0
        %v1623 = vsel %vm647, %v1542, -inf
        %1624 = vmax.xlane.f32.xlu0 %v1623
        %v1625 = vpop.xlane.xlu0 %1624
        %v1626 = vsel %vm647, %v1620, -inf
        %1627 = vmax.xlane.f32.xlu0 %v1626
        %v1628 = vpop.xlane.xlu0 %1627
        %v1629 = vsub.f32 %v1542, %v1625
        %v1630 = vsub.f32 %v1620, %v1628
        %v1631 = vmul.f32 %v1629, 1.442695
        %v1632 = vpow.pop %v1631
        %v1633 = vmul.f32 %v1630, 1.442695
        %v1634 = vpow.pop %v1633
        %v1635 = vsel %vm647, %v1632, 0.0
        %1636 = vadd.xlane.f32.xlu0 %v1635
        %v1637 = vpop.xlane.xlu0 %1636
        %v1638 = vsel %vm647, %v1634, 0.0
        %1639 = vadd.xlane.f32.xlu0 %v1638
        %v1640 = vpop.xlane.xlu0 %1639
        %v1641 = vrcp.pop %v1637
        %v1642 = vmul.f32 %v1632, %v1641
        %v1643 = vrcp.pop %v1640
        %v1644 = vmul.f32 %v1634, %v1643
        %1645 = vrot.lane.b32.xlu0 %v597, 48
        %v1646 = vpop.permute.xlu0 %1645
        %v1649 = vsel %vm647, %v1642, 0
        %1651 = vmatprep.subr.mxu0 0.0
        %1652 = vmatpush1.msra.mxu0 0.0
        %1653 = vmatprep.subr.mxu0 0.0
        %1654 = vmatpush1.msra.mxu0 0.0
        %1655 = vmatprep.subr.mxu0 0.0
        %1656 = vmatpush1.msra.mxu0 0.0
        %1657 = vmatprep.subr.mxu0 0.0
        %1658 = vmatpush1.msra.mxu0 0.0
        %1659 = vmatprep.subr.mxu0 0.0
        %1660 = vmatpush1.msra.mxu0 0.0
        %1661 = vmatprep.subr.mxu0 0.0
        %1662 = vmatpush1.msra.mxu0 0.0
        %1663 = vmatprep.subr.mxu0 0.0
        %1664 = vmatpush1.msra.mxu0 0.0
        %1665 = vmatprep.subr.mxu0 0.0
        %1666 = vmatpush1.msra.mxu0 0.0
        %1667 = vmatprep.subr.mxu0 0.0
        %1668 = vmatpush1.msra.mxu0 0.0
        %1669 = vmatprep.subr.mxu0 0.0
        %1670 = vmatpush1.msra.mxu0 0.0
        %1671 = vmatprep.subr.mxu0 0.0
        %1672 = vmatpush1.msra.mxu0 0.0
        %1673 = vmatprep.subr.mxu0 0.0
        %1674 = vmatpush1.msra.mxu0 0.0
        %1675 = vmatprep.subr.mxu0 0.0
        %1676 = vmatpush1.msra.mxu0 0.0
        %1677 = vmatprep.subr.mxu0 0.0
        %1678 = vmatpush1.msra.mxu0 0.0
        %1679 = vmatprep.subr.mxu0 0.0
        %1680 = vmatpush1.msra.mxu0 0.0
        %1681 = vmatprep.subr.mxu0 0.0
        %1682 = vmatpush1.msra.mxu0 %v1646
        %1683 = vmatprep.subr.mxu0 0.0
        %1684 = vmatpush2.msra.mxu0 0.0
        %1685 = vmatprep.subr.mxu0 0.0
        %1686 = vmatpush2.msra.mxu0 0.0
        %1687 = vmatprep.subr.mxu0 0.0
        %1688 = vmatpush2.msra.mxu0 0.0
        %1689 = vmatprep.subr.mxu0 0.0
        %1690 = vmatpush2.msra.mxu0 0.0
        %1691 = vmatprep.subr.mxu0 0.0
        %1692 = vmatpush2.msra.mxu0 0.0
        %1693 = vmatprep.subr.mxu0 0.0
        %1694 = vmatpush2.msra.mxu0 0.0
        %1695 = vmatprep.subr.mxu0 0.0
        %1696 = vmatpush2.msra.mxu0 0.0
        %1697 = vmatprep.subr.mxu0 0.0
        %1698 = vmatpush2.msra.mxu0 0.0
        %1699 = vmatprep.subr.mxu0 0.0
        %1700 = vmatpush2.msra.mxu0 0.0
        %1701 = vmatprep.subr.mxu0 0.0
        %1702 = vmatpush2.msra.mxu0 0.0
        %1703 = vmatprep.subr.mxu0 0.0
        %1704 = vmatpush2.msra.mxu0 0.0
        %1705 = vmatprep.subr.mxu0 0.0
        %1706 = vmatpush2.msra.mxu0 0.0
        %1707 = vmatprep.subr.mxu0 0.0
        %1708 = vmatpush2.msra.mxu0 0.0
        %1709 = vmatprep.subr.mxu0 0.0
        %1710 = vmatpush2.msra.mxu0 0.0
        %1711 = vmatprep.subr.mxu0 0.0
        %1712 = vmatpush2.msra.mxu0 0.0
        %1713 = vmatprep.subr.mxu0 0.0
        %1714 = vmatpush2.msra.mxu0 0.0
        %1715 = vmatprep.mubr.f32.mxu0 0.0
        %1716 = vmatmul.mubr.f32.gmra.mxu0 %v1649
        %v1717 = vpop.f32.mrf.mxu0
        %v1718 = vadd.f32 0.0, %v1717
        %v1719 = vpop.f32.mrf.mxu0
        %1720 = vdwg.mxu0
        %1721 = vrot.lane.b32.xlu0 %v602, 48
        %v1722 = vpop.permute.xlu0 %1721
        %v1725 = vsel %vm647, %v1644, 0
        %1727 = vmatprep.subr.mxu0 0.0
        %1728 = vmatpush1.msra.mxu0 0.0
        %1729 = vmatprep.subr.mxu0 0.0
        %1730 = vmatpush1.msra.mxu0 0.0
        %1731 = vmatprep.subr.mxu0 0.0
        %1732 = vmatpush1.msra.mxu0 0.0
        %1733 = vmatprep.subr.mxu0 0.0
        %1734 = vmatpush1.msra.mxu0 0.0
        %1735 = vmatprep.subr.mxu0 0.0
        %1736 = vmatpush1.msra.mxu0 0.0
        %1737 = vmatprep.subr.mxu0 0.0
        %1738 = vmatpush1.msra.mxu0 0.0
        %1739 = vmatprep.subr.mxu0 0.0
        %1740 = vmatpush1.msra.mxu0 0.0
        %1741 = vmatprep.subr.mxu0 0.0
        %1742 = vmatpush1.msra.mxu0 0.0
        %1743 = vmatprep.subr.mxu0 0.0
        %1744 = vmatpush1.msra.mxu0 0.0
        %1745 = vmatprep.subr.mxu0 0.0
        %1746 = vmatpush1.msra.mxu0 0.0
        %1747 = vmatprep.subr.mxu0 0.0
        %1748 = vmatpush1.msra.mxu0 0.0
        %1749 = vmatprep.subr.mxu0 0.0
        %1750 = vmatpush1.msra.mxu0 0.0
        %1751 = vmatprep.subr.mxu0 0.0
        %1752 = vmatpush1.msra.mxu0 0.0
        %1753 = vmatprep.subr.mxu0 0.0
        %1754 = vmatpush1.msra.mxu0 0.0
        %1755 = vmatprep.subr.mxu0 0.0
        %1756 = vmatpush1.msra.mxu0 0.0
        %1757 = vmatprep.subr.mxu0 0.0
        %1758 = vmatpush1.msra.mxu0 %v1722
        %1759 = vmatprep.subr.mxu0 0.0
        %1760 = vmatpush2.msra.mxu0 0.0
        %1761 = vmatprep.subr.mxu0 0.0
        %1762 = vmatpush2.msra.mxu0 0.0
        %1763 = vmatprep.subr.mxu0 0.0
        %1764 = vmatpush2.msra.mxu0 0.0
        %1765 = vmatprep.subr.mxu0 0.0
        %1766 = vmatpush2.msra.mxu0 0.0
        %1767 = vmatprep.subr.mxu0 0.0
        %1768 = vmatpush2.msra.mxu0 0.0
        %1769 = vmatprep.subr.mxu0 0.0
        %1770 = vmatpush2.msra.mxu0 0.0
        %1771 = vmatprep.subr.mxu0 0.0
        %1772 = vmatpush2.msra.mxu0 0.0
        %1773 = vmatprep.subr.mxu0 0.0
        %1774 = vmatpush2.msra.mxu0 0.0
        %1775 = vmatprep.subr.mxu0 0.0
        %1776 = vmatpush2.msra.mxu0 0.0
        %1777 = vmatprep.subr.mxu0 0.0
        %1778 = vmatpush2.msra.mxu0 0.0
        %1779 = vmatprep.subr.mxu0 0.0
        %1780 = vmatpush2.msra.mxu0 0.0
        %1781 = vmatprep.subr.mxu0 0.0
        %1782 = vmatpush2.msra.mxu0 0.0
        %1783 = vmatprep.subr.mxu0 0.0
        %1784 = vmatpush2.msra.mxu0 0.0
        %1785 = vmatprep.subr.mxu0 0.0
        %1786 = vmatpush2.msra.mxu0 0.0
        %1787 = vmatprep.subr.mxu0 0.0
        %1788 = vmatpush2.msra.mxu0 0.0
        %1789 = vmatprep.subr.mxu0 0.0
        %1790 = vmatpush2.msra.mxu0 0.0
        %1791 = vmatprep.mubr.f32.mxu0 0.0
        %1792 = vmatmul.mubr.f32.gmra.mxu0 %v1725
        %v1793 = vpop.f32.mrf.mxu0
        %v1794 = vadd.f32 0.0, %v1793
        %v1795 = vpop.f32.mrf.mxu0
        %1796 = vdwg.mxu0
        %v1798 = vsel %vm647, %v1718, 0
        %v1801 = vsel %vm647, %v1794, 0
        %1803 = vmatprep.subr.mxu0 0.0
        %1804 = vmatpush1.msra.mxu0 0.0
        %1805 = vmatprep.subr.mxu0 0.0
        %1806 = vmatpush1.msra.mxu0 0.0
        %1807 = vmatprep.subr.mxu0 0.0
        %1808 = vmatpush1.msra.mxu0 0.0
        %1809 = vmatprep.subr.mxu0 0.0
        %1810 = vmatpush1.msra.mxu0 0.0
        %1811 = vmatprep.subr.mxu0 0.0
        %1812 = vmatpush1.msra.mxu0 0.0
        %1813 = vmatprep.subr.mxu0 0.0
        %1814 = vmatpush1.msra.mxu0 0.0
        %1815 = vmatprep.subr.mxu0 0.0
        %1816 = vmatpush1.msra.mxu0 0.0
        %1817 = vmatprep.subr.mxu0 0.0
        %1818 = vmatpush1.msra.mxu0 0.0
        %1819 = vmatprep.subr.mxu0 0.0
        %1820 = vmatpush1.msra.mxu0 0.0
        %1821 = vmatprep.subr.mxu0 0.0
        %1822 = vmatpush1.msra.mxu0 0.0
        %1823 = vmatprep.subr.mxu0 0.0
        %1824 = vmatpush1.msra.mxu0 0.0
        %1825 = vmatprep.subr.mxu0 0.0
        %1826 = vmatpush1.msra.mxu0 0.0
        %1827 = vmatprep.subr.mxu0 0.0
        %1828 = vmatpush1.msra.mxu0 0.0
        %1829 = vmatprep.subr.mxu0 0.0
        %1830 = vmatpush1.msra.mxu0 0.0
        %1831 = vmatprep.subr.mxu0 0.0
        %1832 = vmatpush1.msra.mxu0 0.0
        %1833 = vmatprep.subr.mxu0 0.0
        %1834 = vmatpush1.msra.mxu0 %v609
        %1835 = vmatprep.subr.mxu0 0.0
        %1836 = vmatpush2.msra.mxu0 0.0
        %1837 = vmatprep.subr.mxu0 0.0
        %1838 = vmatpush2.msra.mxu0 0.0
        %1839 = vmatprep.subr.mxu0 0.0
        %1840 = vmatpush2.msra.mxu0 0.0
        %1841 = vmatprep.subr.mxu0 0.0
        %1842 = vmatpush2.msra.mxu0 0.0
        %1843 = vmatprep.subr.mxu0 0.0
        %1844 = vmatpush2.msra.mxu0 0.0
        %1845 = vmatprep.subr.mxu0 0.0
        %1846 = vmatpush2.msra.mxu0 0.0
        %1847 = vmatprep.subr.mxu0 0.0
        %1848 = vmatpush2.msra.mxu0 0.0
        %1849 = vmatprep.subr.mxu0 0.0
        %1850 = vmatpush2.msra.mxu0 0.0
        %1851 = vmatprep.subr.mxu0 0.0
        %1852 = vmatpush2.msra.mxu0 0.0
        %1853 = vmatprep.subr.mxu0 0.0
        %1854 = vmatpush2.msra.mxu0 0.0
        %1855 = vmatprep.subr.mxu0 0.0
        %1856 = vmatpush2.msra.mxu0 0.0
        %1857 = vmatprep.subr.mxu0 0.0
        %1858 = vmatpush2.msra.mxu0 0.0
        %1859 = vmatprep.subr.mxu0 0.0
        %1860 = vmatpush2.msra.mxu0 0.0
        %1861 = vmatprep.subr.mxu0 0.0
        %1862 = vmatpush2.msra.mxu0 0.0
        %1863 = vmatprep.subr.mxu0 0.0
        %1864 = vmatpush2.msra.mxu0 0.0
        %1865 = vmatprep.subr.mxu0 0.0
        %1866 = vmatpush2.msra.mxu0 0.0
        %1867 = vmatprep.mubr.f32.mxu0 0.0
        %1868 = vmatmul.mubr.f32.gmra.mxu0 %v1798
        %v1869 = vpop.f32.mrf.mxu0
        %v1870 = vadd.f32 0.0, %v1869
        %v1871 = vpop.f32.mrf.mxu0
        %1872 = vmatprep.mubr.f32.mxu0 0.0
        %1873 = vmatmul.mubr.f32.gmra.mxu0 %v1801
        %v1874 = vpop.f32.mrf.mxu0
        %v1875 = vadd.f32 0.0, %v1874
        %v1876 = vpop.f32.mrf.mxu0
        %1877 = vdwg.mxu0
        %v1878 = vadd.f32 %v1459, %v1870
        %v1879 = vadd.f32 %v1464, %v1875
        %1880 = vrot.lane.b32.xlu0 %v605, 104
        %v1881 = vpop.permute.xlu0 %1880
        %1882 = vrot.lane.b32.xlu0 %v597, 72
        %v1883 = vpop.permute.xlu0 %1882
        %v1884 = vsel %vm647, %v1881, 0
        %v1886 = vsel %vm647, %v1883, 0
        %1888 = vmatprep.subr.mxu0 0.0
        %1889 = vmatpush1.xpose.msra.mxu0 0.0
        %1890 = vmatprep.subr.mxu0 0.0
        %1891 = vmatpush1.xpose.msra.mxu0 0.0
        %1892 = vmatprep.subr.mxu0 0.0
        %1893 = vmatpush1.xpose.msra.mxu0 0.0
        %1894 = vmatprep.subr.mxu0 0.0
        %1895 = vmatpush1.xpose.msra.mxu0 0.0
        %1896 = vmatprep.subr.mxu0 0.0
        %1897 = vmatpush1.xpose.msra.mxu0 0.0
        %1898 = vmatprep.subr.mxu0 0.0
        %1899 = vmatpush1.xpose.msra.mxu0 0.0
        %1900 = vmatprep.subr.mxu0 0.0
        %1901 = vmatpush1.xpose.msra.mxu0 0.0
        %1902 = vmatprep.subr.mxu0 0.0
        %1903 = vmatpush1.xpose.msra.mxu0 0.0
        %1904 = vmatprep.subr.mxu0 0.0
        %1905 = vmatpush1.xpose.msra.mxu0 0.0
        %1906 = vmatprep.subr.mxu0 0.0
        %1907 = vmatpush1.xpose.msra.mxu0 0.0
        %1908 = vmatprep.subr.mxu0 0.0
        %1909 = vmatpush1.xpose.msra.mxu0 0.0
        %1910 = vmatprep.subr.mxu0 0.0
        %1911 = vmatpush1.xpose.msra.mxu0 0.0
        %1912 = vmatprep.subr.mxu0 0.0
        %1913 = vmatpush1.xpose.msra.mxu0 0.0
        %1914 = vmatprep.subr.mxu0 0.0
        %1915 = vmatpush1.xpose.msra.mxu0 0.0
        %1916 = vmatprep.subr.mxu0 0.0
        %1917 = vmatpush1.xpose.msra.mxu0 0.0
        %1918 = vmatprep.subr.mxu0 0.0
        %1919 = vmatpush1.xpose.msra.mxu0 %v1886
        %1920 = vmatprep.subr.mxu0 0.0
        %1921 = vmatpush2.xpose.msra.mxu0 0.0
        %1922 = vmatprep.subr.mxu0 0.0
        %1923 = vmatpush2.xpose.msra.mxu0 0.0
        %1924 = vmatprep.subr.mxu0 0.0
        %1925 = vmatpush2.xpose.msra.mxu0 0.0
        %1926 = vmatprep.subr.mxu0 0.0
        %1927 = vmatpush2.xpose.msra.mxu0 0.0
        %1928 = vmatprep.subr.mxu0 0.0
        %1929 = vmatpush2.xpose.msra.mxu0 0.0
        %1930 = vmatprep.subr.mxu0 0.0
        %1931 = vmatpush2.xpose.msra.mxu0 0.0
        %1932 = vmatprep.subr.mxu0 0.0
        %1933 = vmatpush2.xpose.msra.mxu0 0.0
        %1934 = vmatprep.subr.mxu0 0.0
        %1935 = vmatpush2.xpose.msra.mxu0 0.0
        %1936 = vmatprep.subr.mxu0 0.0
        %1937 = vmatpush2.xpose.msra.mxu0 0.0
        %1938 = vmatprep.subr.mxu0 0.0
        %1939 = vmatpush2.xpose.msra.mxu0 0.0
        %1940 = vmatprep.subr.mxu0 0.0
        %1941 = vmatpush2.xpose.msra.mxu0 0.0
        %1942 = vmatprep.subr.mxu0 0.0
        %1943 = vmatpush2.xpose.msra.mxu0 0.0
        %1944 = vmatprep.subr.mxu0 0.0
        %1945 = vmatpush2.xpose.msra.mxu0 0.0
        %1946 = vmatprep.subr.mxu0 0.0
        %1947 = vmatpush2.xpose.msra.mxu0 0.0
        %1948 = vmatprep.subr.mxu0 0.0
        %1949 = vmatpush2.xpose.msra.mxu0 0.0
        %1950 = vmatprep.subr.mxu0 0.0
        %1951 = vmatpush2.xpose.msra.mxu0 0.0
        %1952 = vmatprep.mubr.f32.mxu0 0.0
        %1953 = vmatmul.mubr.f32.gmra.mxu0 %v1884
        %v1954 = vpop.f32.mrf.mxu0
        %v1955 = vadd.f32 %v637, %v1954
        %v1956 = vpop.f32.mrf.mxu0
        %1957 = vdwg.mxu0
        %1958 = vrot.lane.b32.xlu0 %v606, 104
        %v1959 = vpop.permute.xlu0 %1958
        %1960 = vrot.lane.b32.xlu0 %v602, 72
        %v1961 = vpop.permute.xlu0 %1960
        %v1962 = vsel %vm647, %v1959, 0
        %v1964 = vsel %vm647, %v1961, 0
        %1966 = vmatprep.subr.mxu0 0.0
        %1967 = vmatpush1.xpose.msra.mxu0 0.0
        %1968 = vmatprep.subr.mxu0 0.0
        %1969 = vmatpush1.xpose.msra.mxu0 0.0
        %1970 = vmatprep.subr.mxu0 0.0
        %1971 = vmatpush1.xpose.msra.mxu0 0.0
        %1972 = vmatprep.subr.mxu0 0.0
        %1973 = vmatpush1.xpose.msra.mxu0 0.0
        %1974 = vmatprep.subr.mxu0 0.0
        %1975 = vmatpush1.xpose.msra.mxu0 0.0
        %1976 = vmatprep.subr.mxu0 0.0
        %1977 = vmatpush1.xpose.msra.mxu0 0.0
        %1978 = vmatprep.subr.mxu0 0.0
        %1979 = vmatpush1.xpose.msra.mxu0 0.0
        %1980 = vmatprep.subr.mxu0 0.0
        %1981 = vmatpush1.xpose.msra.mxu0 0.0
        %1982 = vmatprep.subr.mxu0 0.0
        %1983 = vmatpush1.xpose.msra.mxu0 0.0
        %1984 = vmatprep.subr.mxu0 0.0
        %1985 = vmatpush1.xpose.msra.mxu0 0.0
        %1986 = vmatprep.subr.mxu0 0.0
        %1987 = vmatpush1.xpose.msra.mxu0 0.0
        %1988 = vmatprep.subr.mxu0 0.0
        %1989 = vmatpush1.xpose.msra.mxu0 0.0
        %1990 = vmatprep.subr.mxu0 0.0
        %1991 = vmatpush1.xpose.msra.mxu0 0.0
        %1992 = vmatprep.subr.mxu0 0.0
        %1993 = vmatpush1.xpose.msra.mxu0 0.0
        %1994 = vmatprep.subr.mxu0 0.0
        %1995 = vmatpush1.xpose.msra.mxu0 0.0
        %1996 = vmatprep.subr.mxu0 0.0
        %1997 = vmatpush1.xpose.msra.mxu0 %v1964
        %1998 = vmatprep.subr.mxu0 0.0
        %1999 = vmatpush2.xpose.msra.mxu0 0.0
        %2000 = vmatprep.subr.mxu0 0.0
        %2001 = vmatpush2.xpose.msra.mxu0 0.0
        %2002 = vmatprep.subr.mxu0 0.0
        %2003 = vmatpush2.xpose.msra.mxu0 0.0
        %2004 = vmatprep.subr.mxu0 0.0
        %2005 = vmatpush2.xpose.msra.mxu0 0.0
        %2006 = vmatprep.subr.mxu0 0.0
        %2007 = vmatpush2.xpose.msra.mxu0 0.0
        %2008 = vmatprep.subr.mxu0 0.0
        %2009 = vmatpush2.xpose.msra.mxu0 0.0
        %2010 = vmatprep.subr.mxu0 0.0
        %2011 = vmatpush2.xpose.msra.mxu0 0.0
        %2012 = vmatprep.subr.mxu0 0.0
        %2013 = vmatpush2.xpose.msra.mxu0 0.0
        %2014 = vmatprep.subr.mxu0 0.0
        %2015 = vmatpush2.xpose.msra.mxu0 0.0
        %2016 = vmatprep.subr.mxu0 0.0
        %2017 = vmatpush2.xpose.msra.mxu0 0.0
        %2018 = vmatprep.subr.mxu0 0.0
        %2019 = vmatpush2.xpose.msra.mxu0 0.0
        %2020 = vmatprep.subr.mxu0 0.0
        %2021 = vmatpush2.xpose.msra.mxu0 0.0
        %2022 = vmatprep.subr.mxu0 0.0
        %2023 = vmatpush2.xpose.msra.mxu0 0.0
        %2024 = vmatprep.subr.mxu0 0.0
        %2025 = vmatpush2.xpose.msra.mxu0 0.0
        %2026 = vmatprep.subr.mxu0 0.0
        %2027 = vmatpush2.xpose.msra.mxu0 0.0
        %2028 = vmatprep.subr.mxu0 0.0
        %2029 = vmatpush2.xpose.msra.mxu0 0.0
        %2030 = vmatprep.mubr.f32.mxu0 0.0
        %2031 = vmatmul.mubr.f32.gmra.mxu0 %v1962
        %v2032 = vpop.f32.mrf.mxu0
        %v2033 = vadd.f32 %v641, %v2032
        %v2034 = vpop.f32.mrf.mxu0
        %2035 = vdwg.mxu0
        %v2036 = vsel %vm647, %v1955, -inf
        %2037 = vmax.xlane.f32.xlu0 %v2036
        %v2038 = vpop.xlane.xlu0 %2037
        %v2039 = vsel %vm647, %v2033, -inf
        %2040 = vmax.xlane.f32.xlu0 %v2039
        %v2041 = vpop.xlane.xlu0 %2040
        %v2042 = vsub.f32 %v1955, %v2038
        %v2043 = vsub.f32 %v2033, %v2041
        %v2044 = vmul.f32 %v2042, 1.442695
        %v2045 = vpow.pop %v2044
        %v2046 = vmul.f32 %v2043, 1.442695
        %v2047 = vpow.pop %v2046
        %v2048 = vsel %vm647, %v2045, 0.0
        %2049 = vadd.xlane.f32.xlu0 %v2048
        %v2050 = vpop.xlane.xlu0 %2049
        %v2051 = vsel %vm647, %v2047, 0.0
        %2052 = vadd.xlane.f32.xlu0 %v2051
        %v2053 = vpop.xlane.xlu0 %2052
        %v2054 = vrcp.pop %v2050
        %v2055 = vmul.f32 %v2045, %v2054
        %v2056 = vrcp.pop %v2053
        %v2057 = vmul.f32 %v2047, %v2056
        %2058 = vrot.lane.b32.xlu0 %v597, 40
        %v2059 = vpop.permute.xlu0 %2058
        %v2062 = vsel %vm647, %v2055, 0
        %2064 = vmatprep.subr.mxu0 0.0
        %2065 = vmatpush1.msra.mxu0 0.0
        %2066 = vmatprep.subr.mxu0 0.0
        %2067 = vmatpush1.msra.mxu0 0.0
        %2068 = vmatprep.subr.mxu0 0.0
        %2069 = vmatpush1.msra.mxu0 0.0
        %2070 = vmatprep.subr.mxu0 0.0
        %2071 = vmatpush1.msra.mxu0 0.0
        %2072 = vmatprep.subr.mxu0 0.0
        %2073 = vmatpush1.msra.mxu0 0.0
        %2074 = vmatprep.subr.mxu0 0.0
        %2075 = vmatpush1.msra.mxu0 0.0
        %2076 = vmatprep.subr.mxu0 0.0
        %2077 = vmatpush1.msra.mxu0 0.0
        %2078 = vmatprep.subr.mxu0 0.0
        %2079 = vmatpush1.msra.mxu0 0.0
        %2080 = vmatprep.subr.mxu0 0.0
        %2081 = vmatpush1.msra.mxu0 0.0
        %2082 = vmatprep.subr.mxu0 0.0
        %2083 = vmatpush1.msra.mxu0 0.0
        %2084 = vmatprep.subr.mxu0 0.0
        %2085 = vmatpush1.msra.mxu0 0.0
        %2086 = vmatprep.subr.mxu0 0.0
        %2087 = vmatpush1.msra.mxu0 0.0
        %2088 = vmatprep.subr.mxu0 0.0
        %2089 = vmatpush1.msra.mxu0 0.0
        %2090 = vmatprep.subr.mxu0 0.0
        %2091 = vmatpush1.msra.mxu0 0.0
        %2092 = vmatprep.subr.mxu0 0.0
        %2093 = vmatpush1.msra.mxu0 0.0
        %2094 = vmatprep.subr.mxu0 0.0
        %2095 = vmatpush1.msra.mxu0 %v2059
        %2096 = vmatprep.subr.mxu0 0.0
        %2097 = vmatpush2.msra.mxu0 0.0
        %2098 = vmatprep.subr.mxu0 0.0
        %2099 = vmatpush2.msra.mxu0 0.0
        %2100 = vmatprep.subr.mxu0 0.0
        %2101 = vmatpush2.msra.mxu0 0.0
        %2102 = vmatprep.subr.mxu0 0.0
        %2103 = vmatpush2.msra.mxu0 0.0
        %2104 = vmatprep.subr.mxu0 0.0
        %2105 = vmatpush2.msra.mxu0 0.0
        %2106 = vmatprep.subr.mxu0 0.0
        %2107 = vmatpush2.msra.mxu0 0.0
        %2108 = vmatprep.subr.mxu0 0.0
        %2109 = vmatpush2.msra.mxu0 0.0
        %2110 = vmatprep.subr.mxu0 0.0
        %2111 = vmatpush2.msra.mxu0 0.0
        %2112 = vmatprep.subr.mxu0 0.0
        %2113 = vmatpush2.msra.mxu0 0.0
        %2114 = vmatprep.subr.mxu0 0.0
        %2115 = vmatpush2.msra.mxu0 0.0
        %2116 = vmatprep.subr.mxu0 0.0
        %2117 = vmatpush2.msra.mxu0 0.0
        %2118 = vmatprep.subr.mxu0 0.0
        %2119 = vmatpush2.msra.mxu0 0.0
        %2120 = vmatprep.subr.mxu0 0.0
        %2121 = vmatpush2.msra.mxu0 0.0
        %2122 = vmatprep.subr.mxu0 0.0
        %2123 = vmatpush2.msra.mxu0 0.0
        %2124 = vmatprep.subr.mxu0 0.0
        %2125 = vmatpush2.msra.mxu0 0.0
        %2126 = vmatprep.subr.mxu0 0.0
        %2127 = vmatpush2.msra.mxu0 0.0
        %2128 = vmatprep.mubr.f32.mxu0 0.0
        %2129 = vmatmul.mubr.f32.gmra.mxu0 %v2062
        %v2130 = vpop.f32.mrf.mxu0
        %v2131 = vadd.f32 0.0, %v2130
        %v2132 = vpop.f32.mrf.mxu0
        %2133 = vdwg.mxu0
        %2134 = vrot.lane.b32.xlu0 %v602, 40
        %v2135 = vpop.permute.xlu0 %2134
        %v2138 = vsel %vm647, %v2057, 0
        %2140 = vmatprep.subr.mxu0 0.0
        %2141 = vmatpush1.msra.mxu0 0.0
        %2142 = vmatprep.subr.mxu0 0.0
        %2143 = vmatpush1.msra.mxu0 0.0
        %2144 = vmatprep.subr.mxu0 0.0
        %2145 = vmatpush1.msra.mxu0 0.0
        %2146 = vmatprep.subr.mxu0 0.0
        %2147 = vmatpush1.msra.mxu0 0.0
        %2148 = vmatprep.subr.mxu0 0.0
        %2149 = vmatpush1.msra.mxu0 0.0
        %2150 = vmatprep.subr.mxu0 0.0
        %2151 = vmatpush1.msra.mxu0 0.0
        %2152 = vmatprep.subr.mxu0 0.0
        %2153 = vmatpush1.msra.mxu0 0.0
        %2154 = vmatprep.subr.mxu0 0.0
        %2155 = vmatpush1.msra.mxu0 0.0
        %2156 = vmatprep.subr.mxu0 0.0
        %2157 = vmatpush1.msra.mxu0 0.0
        %2158 = vmatprep.subr.mxu0 0.0
        %2159 = vmatpush1.msra.mxu0 0.0
        %2160 = vmatprep.subr.mxu0 0.0
        %2161 = vmatpush1.msra.mxu0 0.0
        %2162 = vmatprep.subr.mxu0 0.0
        %2163 = vmatpush1.msra.mxu0 0.0
        %2164 = vmatprep.subr.mxu0 0.0
        %2165 = vmatpush1.msra.mxu0 0.0
        %2166 = vmatprep.subr.mxu0 0.0
        %2167 = vmatpush1.msra.mxu0 0.0
        %2168 = vmatprep.subr.mxu0 0.0
        %2169 = vmatpush1.msra.mxu0 0.0
        %2170 = vmatprep.subr.mxu0 0.0
        %2171 = vmatpush1.msra.mxu0 %v2135
        %2172 = vmatprep.subr.mxu0 0.0
        %2173 = vmatpush2.msra.mxu0 0.0
        %2174 = vmatprep.subr.mxu0 0.0
        %2175 = vmatpush2.msra.mxu0 0.0
        %2176 = vmatprep.subr.mxu0 0.0
        %2177 = vmatpush2.msra.mxu0 0.0
        %2178 = vmatprep.subr.mxu0 0.0
        %2179 = vmatpush2.msra.mxu0 0.0
        %2180 = vmatprep.subr.mxu0 0.0
        %2181 = vmatpush2.msra.mxu0 0.0
        %2182 = vmatprep.subr.mxu0 0.0
        %2183 = vmatpush2.msra.mxu0 0.0
        %2184 = vmatprep.subr.mxu0 0.0
        %2185 = vmatpush2.msra.mxu0 0.0
        %2186 = vmatprep.subr.mxu0 0.0
        %2187 = vmatpush2.msra.mxu0 0.0
        %2188 = vmatprep.subr.mxu0 0.0
        %2189 = vmatpush2.msra.mxu0 0.0
        %2190 = vmatprep.subr.mxu0 0.0
        %2191 = vmatpush2.msra.mxu0 0.0
        %2192 = vmatprep.subr.mxu0 0.0
        %2193 = vmatpush2.msra.mxu0 0.0
        %2194 = vmatprep.subr.mxu0 0.0
        %2195 = vmatpush2.msra.mxu0 0.0
        %2196 = vmatprep.subr.mxu0 0.0
        %2197 = vmatpush2.msra.mxu0 0.0
        %2198 = vmatprep.subr.mxu0 0.0
        %2199 = vmatpush2.msra.mxu0 0.0
        %2200 = vmatprep.subr.mxu0 0.0
        %2201 = vmatpush2.msra.mxu0 0.0
        %2202 = vmatprep.subr.mxu0 0.0
        %2203 = vmatpush2.msra.mxu0 0.0
        %2204 = vmatprep.mubr.f32.mxu0 0.0
        %2205 = vmatmul.mubr.f32.gmra.mxu0 %v2138
        %v2206 = vpop.f32.mrf.mxu0
        %v2207 = vadd.f32 0.0, %v2206
        %v2208 = vpop.f32.mrf.mxu0
        %2209 = vdwg.mxu0
        %v2211 = vsel %vm647, %v2131, 0
        %v2214 = vsel %vm647, %v2207, 0
        %2216 = vmatprep.subr.mxu0 0.0
        %2217 = vmatpush1.msra.mxu0 0.0
        %2218 = vmatprep.subr.mxu0 0.0
        %2219 = vmatpush1.msra.mxu0 0.0
        %2220 = vmatprep.subr.mxu0 0.0
        %2221 = vmatpush1.msra.mxu0 0.0
        %2222 = vmatprep.subr.mxu0 0.0
        %2223 = vmatpush1.msra.mxu0 0.0
        %2224 = vmatprep.subr.mxu0 0.0
        %2225 = vmatpush1.msra.mxu0 0.0
        %2226 = vmatprep.subr.mxu0 0.0
        %2227 = vmatpush1.msra.mxu0 0.0
        %2228 = vmatprep.subr.mxu0 0.0
        %2229 = vmatpush1.msra.mxu0 0.0
        %2230 = vmatprep.subr.mxu0 0.0
        %2231 = vmatpush1.msra.mxu0 0.0
        %2232 = vmatprep.subr.mxu0 0.0
        %2233 = vmatpush1.msra.mxu0 0.0
        %2234 = vmatprep.subr.mxu0 0.0
        %2235 = vmatpush1.msra.mxu0 0.0
        %2236 = vmatprep.subr.mxu0 0.0
        %2237 = vmatpush1.msra.mxu0 0.0
        %2238 = vmatprep.subr.mxu0 0.0
        %2239 = vmatpush1.msra.mxu0 0.0
        %2240 = vmatprep.subr.mxu0 0.0
        %2241 = vmatpush1.msra.mxu0 0.0
        %2242 = vmatprep.subr.mxu0 0.0
        %2243 = vmatpush1.msra.mxu0 0.0
        %2244 = vmatprep.subr.mxu0 0.0
        %2245 = vmatpush1.msra.mxu0 0.0
        %2246 = vmatprep.subr.mxu0 0.0
        %2247 = vmatpush1.msra.mxu0 %v610
        %2248 = vmatprep.subr.mxu0 0.0
        %2249 = vmatpush2.msra.mxu0 0.0
        %2250 = vmatprep.subr.mxu0 0.0
        %2251 = vmatpush2.msra.mxu0 0.0
        %2252 = vmatprep.subr.mxu0 0.0
        %2253 = vmatpush2.msra.mxu0 0.0
        %2254 = vmatprep.subr.mxu0 0.0
        %2255 = vmatpush2.msra.mxu0 0.0
        %2256 = vmatprep.subr.mxu0 0.0
        %2257 = vmatpush2.msra.mxu0 0.0
        %2258 = vmatprep.subr.mxu0 0.0
        %2259 = vmatpush2.msra.mxu0 0.0
        %2260 = vmatprep.subr.mxu0 0.0
        %2261 = vmatpush2.msra.mxu0 0.0
        %2262 = vmatprep.subr.mxu0 0.0
        %2263 = vmatpush2.msra.mxu0 0.0
        %2264 = vmatprep.subr.mxu0 0.0
        %2265 = vmatpush2.msra.mxu0 0.0
        %2266 = vmatprep.subr.mxu0 0.0
        %2267 = vmatpush2.msra.mxu0 0.0
        %2268 = vmatprep.subr.mxu0 0.0
        %2269 = vmatpush2.msra.mxu0 0.0
        %2270 = vmatprep.subr.mxu0 0.0
        %2271 = vmatpush2.msra.mxu0 0.0
        %2272 = vmatprep.subr.mxu0 0.0
        %2273 = vmatpush2.msra.mxu0 0.0
        %2274 = vmatprep.subr.mxu0 0.0
        %2275 = vmatpush2.msra.mxu0 0.0
        %2276 = vmatprep.subr.mxu0 0.0
        %2277 = vmatpush2.msra.mxu0 0.0
        %2278 = vmatprep.subr.mxu0 0.0
        %2279 = vmatpush2.msra.mxu0 0.0
        %2280 = vmatprep.mubr.f32.mxu0 0.0
        %2281 = vmatmul.mubr.f32.gmra.mxu0 %v2211
        %v2282 = vpop.f32.mrf.mxu0
        %v2283 = vadd.f32 0.0, %v2282
        %v2284 = vpop.f32.mrf.mxu0
        %2285 = vmatprep.mubr.f32.mxu0 0.0
        %2286 = vmatmul.mubr.f32.gmra.mxu0 %v2214
        %v2287 = vpop.f32.mrf.mxu0
        %v2288 = vadd.f32 0.0, %v2287
        %v2289 = vpop.f32.mrf.mxu0
        %2290 = vdwg.mxu0
        %v2291 = vadd.f32 %v1878, %v2283
        %v2292 = vadd.f32 %v1879, %v2288
        %v2293 = vadd.f32 %v462, %v2291
        %v2294 = vadd.f32 %v463, %v2292
        %v2295 = vsel %vm466, %v2293, 0.0
        %2296 = vadd.xlane.f32.xlu0 %v2295
        %v2297 = vpop.xlane.xlu0 %2296
        %v2298 = vsel %vm466, %v2294, 0.0
        %2299 = vadd.xlane.f32.xlu0 %v2298
        %v2300 = vpop.xlane.xlu0 %2299
        %v2301 = vmul.f32 %v2297, %v473
        %v2302 = vmul.f32 %v2300, %v473
        %v2303 = vsub.f32 %v2293, %v2301
        %v2304 = vsub.f32 %v2294, %v2302
        %v2305 = vmul.f32 %v2303, %v2303
        %v2306 = vmul.f32 %v2304, %v2304
        %v2307 = vsel %vm466, %v2305, 0.0
        %2308 = vadd.xlane.f32.xlu0 %v2307
        %v2309 = vpop.xlane.xlu0 %2308
        %v2310 = vsel %vm466, %v2306, 0.0
        %2311 = vadd.xlane.f32.xlu0 %v2310
        %v2312 = vpop.xlane.xlu0 %2311
        %v2313 = vmul.f32 %v2309, 0.032258064
        %v2314 = vmul.f32 %v2312, 0.032258064
        %v2315 = vrsqrt.pop %v2313
        %v2316 = vmul.f32 %v2313, %v2315
        %vm2317 = vcmp.eq.f32.partialorder %v2313, inf
        %v2318 = vsel %vm2317, %v2313, %v2316
        %vm2319 = vcmp.eq.f32.partialorder %v2313, 0.0
        %v2320 = vand.u32 %v2313, 2147483648
        %v2321 = vsel %vm2319, %v2320, %v2318
        %v2322 = vrsqrt.pop %v2314
        %v2323 = vmul.f32 %v2314, %v2322
        %vm2324 = vcmp.eq.f32.partialorder %v2314, inf
        %v2325 = vsel %vm2324, %v2314, %v2323
        %vm2326 = vcmp.eq.f32.partialorder %v2314, 0.0
        %v2327 = vand.u32 %v2314, 2147483648
        %v2328 = vsel %vm2326, %v2327, %v2325
        %v2329 = vlaneseq
        %v2330 = vshrl.u32 %v2329, 7
        %v2331 = vsub.s32 2, %v2330
        %v2332 = vrot.slane %v464, %v2331
        %v2333 = vmul.f32 %v2332, %v2303
        %v2334 = vmul.f32 %v2332, %v2304
        %v2335 = vadd.f32 %v2321, 1e-06
        %v2336 = vadd.f32 %v2328, 1e-06
        %v2337 = vrcp.pop %v2335
        %v2338 = vmul.f32 %v2333, %v2337
        %v2339 = vrcp.pop %v2336
        %v2340 = vmul.f32 %v2334, %v2339
        %v2341 = vlaneseq
        %v2342 = vshrl.u32 %v2341, 7
        %v2343 = vsub.s32 3, %v2342
        %v2344 = vrot.slane %v464, %v2343
        %v2345 = vadd.f32 %v2338, %v2344
        %v2346 = vadd.f32 %v2340, %v2344
        %v2347 = vld [vmem:[%s442] sm:$0xff]
        %v2348 = vld [vmem:[%s442 + $0x8] sm:$0xff]
        %v2349 = vld [vmem:[%s442 + $0x10] sm:$0xff]
        %v2350 = vld [vmem:[%s442 + $0x18] sm:$0xff]
        %v2351 = vlaneseq
        %v2352 = vshrl.u32 %v2351, 7
        %v2353 = vsub.s32 4, %v2352
        %v2354 = vrot.slane %v464, %v2353
        %v2356 = vsel %vm466, %v2345, 0
        %v2359 = vsel %vm466, %v2346, 0
        %2361 = vmatprep.subr.mxu0 0.0
        %2362 = vmatpush1.msra.mxu0 0.0
        %2363 = vmatprep.subr.mxu0 0.0
        %2364 = vmatpush1.msra.mxu0 0.0
        %2365 = vmatprep.subr.mxu0 0.0
        %2366 = vmatpush1.msra.mxu0 0.0
        %2367 = vmatprep.subr.mxu0 0.0
        %2368 = vmatpush1.msra.mxu0 0.0
        %2369 = vmatprep.subr.mxu0 0.0
        %2370 = vmatpush1.msra.mxu0 0.0
        %2371 = vmatprep.subr.mxu0 0.0
        %2372 = vmatpush1.msra.mxu0 0.0
        %2373 = vmatprep.subr.mxu0 0.0
        %2374 = vmatpush1.msra.mxu0 0.0
        %2375 = vmatprep.subr.mxu0 0.0
        %2376 = vmatpush1.msra.mxu0 0.0
        %2377 = vmatprep.subr.mxu0 0.0
        %2378 = vmatpush1.msra.mxu0 0.0
        %2379 = vmatprep.subr.mxu0 0.0
        %2380 = vmatpush1.msra.mxu0 0.0
        %2381 = vmatprep.subr.mxu0 0.0
        %2382 = vmatpush1.msra.mxu0 0.0
        %2383 = vmatprep.subr.mxu0 0.0
        %2384 = vmatpush1.msra.mxu0 0.0
        %2385 = vmatprep.subr.mxu0 0.0
        %2386 = vmatpush1.msra.mxu0 %v2350
        %2387 = vmatprep.subr.mxu0 0.0
        %2388 = vmatpush1.msra.mxu0 %v2349
        %2389 = vmatprep.subr.mxu0 0.0
        %2390 = vmatpush1.msra.mxu0 %v2348
        %2391 = vmatprep.subr.mxu0 0.0
        %2392 = vmatpush1.msra.mxu0 %v2347
        %2393 = vmatprep.subr.mxu0 0.0
        %2394 = vmatpush2.msra.mxu0 0.0
        %2395 = vmatprep.subr.mxu0 0.0
        %2396 = vmatpush2.msra.mxu0 0.0
        %2397 = vmatprep.subr.mxu0 0.0
        %2398 = vmatpush2.msra.mxu0 0.0
        %2399 = vmatprep.subr.mxu0 0.0
        %2400 = vmatpush2.msra.mxu0 0.0
        %2401 = vmatprep.subr.mxu0 0.0
        %2402 = vmatpush2.msra.mxu0 0.0
        %2403 = vmatprep.subr.mxu0 0.0
        %2404 = vmatpush2.msra.mxu0 0.0
        %2405 = vmatprep.subr.mxu0 0.0
        %2406 = vmatpush2.msra.mxu0 0.0
        %2407 = vmatprep.subr.mxu0 0.0
        %2408 = vmatpush2.msra.mxu0 0.0
        %2409 = vmatprep.subr.mxu0 0.0
        %2410 = vmatpush2.msra.mxu0 0.0
        %2411 = vmatprep.subr.mxu0 0.0
        %2412 = vmatpush2.msra.mxu0 0.0
        %2413 = vmatprep.subr.mxu0 0.0
        %2414 = vmatpush2.msra.mxu0 0.0
        %2415 = vmatprep.subr.mxu0 0.0
        %2416 = vmatpush2.msra.mxu0 0.0
        %2417 = vmatprep.subr.mxu0 0.0
        %2418 = vmatpush2.msra.mxu0 0.0
        %2419 = vmatprep.subr.mxu0 0.0
        %2420 = vmatpush2.msra.mxu0 0.0
        %2421 = vmatprep.subr.mxu0 0.0
        %2422 = vmatpush2.msra.mxu0 0.0
        %2423 = vmatprep.subr.mxu0 0.0
        %2424 = vmatpush2.msra.mxu0 0.0
        %2425 = vmatprep.mubr.f32.mxu0 0.0
        %2426 = vmatmul.mubr.f32.gmra.mxu0 %v2356
        %v2427 = vpop.f32.mrf.mxu0
        %v2428 = vadd.f32 %v2354, %v2427
        %v2429 = vpop.f32.mrf.mxu0
        %2430 = vmatprep.mubr.f32.mxu0 0.0
        %2431 = vmatmul.mubr.f32.gmra.mxu0 %v2359
        %v2432 = vpop.f32.mrf.mxu0
        %v2433 = vadd.f32 %v2354, %v2432
        %v2434 = vpop.f32.mrf.mxu0
        %2435 = vdwg.mxu0
        %v2436 = vmax.f32 %v2428, 0.0
        %v2437 = vmax.f32 %v2433, 0.0
        %v2438 = vld [vmem:[%s447] sm:$0xff]
        %v2439 = vld [vmem:[%s447 + $0x8] sm:$0xff]
        %v2440 = vld [vmem:[%s447 + $0x10] sm:$0xff]
        %v2441 = vld [vmem:[%s447 + $0x18] sm:$0xff]
        %v2442 = vld [vmem:[%s447 + $0x20] sm:$0xff]
        %v2443 = vld [vmem:[%s447 + $0x28] sm:$0xff]
        %v2444 = vld [vmem:[%s447 + $0x30] sm:$0xff]
        %v2445 = vld [vmem:[%s447 + $0x38] sm:$0xff]
        %v2446 = vlaneseq
        %v2447 = vshrl.u32 %v2446, 7
        %v2448 = vsub.s32 5, %v2447
        %v2449 = vrot.slane %v464, %v2448
        %vm2450 = vcmask 523264
        %v2452 = vsel %vm2450, %v2436, 0
        %v2455 = vsel %vm2450, %v2437, 0
        %2457 = vmatprep.subr.mxu0 0.0
        %2458 = vmatpush1.msra.mxu0 0.0
        %2459 = vmatprep.subr.mxu0 0.0
        %2460 = vmatpush1.msra.mxu0 0.0
        %2461 = vmatprep.subr.mxu0 0.0
        %2462 = vmatpush1.msra.mxu0 0.0
        %2463 = vmatprep.subr.mxu0 0.0
        %2464 = vmatpush1.msra.mxu0 0.0
        %2465 = vmatprep.subr.mxu0 0.0
        %2466 = vmatpush1.msra.mxu0 0.0
        %2467 = vmatprep.subr.mxu0 0.0
        %2468 = vmatpush1.msra.mxu0 0.0
        %2469 = vmatprep.subr.mxu0 0.0
        %2470 = vmatpush1.msra.mxu0 0.0
        %2471 = vmatprep.subr.mxu0 0.0
        %2472 = vmatpush1.msra.mxu0 0.0
        %2473 = vmatprep.subr.mxu0 0.0
        %2474 = vmatpush1.msra.mxu0 %v2445
        %2475 = vmatprep.subr.mxu0 0.0
        %2476 = vmatpush1.msra.mxu0 %v2444
        %2477 = vmatprep.subr.mxu0 0.0
        %2478 = vmatpush1.msra.mxu0 %v2443
        %2479 = vmatprep.subr.mxu0 0.0
        %2480 = vmatpush1.msra.mxu0 %v2442
        %2481 = vmatprep.subr.mxu0 0.0
        %2482 = vmatpush1.msra.mxu0 %v2441
        %2483 = vmatprep.subr.mxu0 0.0
        %2484 = vmatpush1.msra.mxu0 %v2440
        %2485 = vmatprep.subr.mxu0 0.0
        %2486 = vmatpush1.msra.mxu0 %v2439
        %2487 = vmatprep.subr.mxu0 0.0
        %2488 = vmatpush1.msra.mxu0 %v2438
        %2489 = vmatprep.subr.mxu0 0.0
        %2490 = vmatpush2.msra.mxu0 0.0
        %2491 = vmatprep.subr.mxu0 0.0
        %2492 = vmatpush2.msra.mxu0 0.0
        %2493 = vmatprep.subr.mxu0 0.0
        %2494 = vmatpush2.msra.mxu0 0.0
        %2495 = vmatprep.subr.mxu0 0.0
        %2496 = vmatpush2.msra.mxu0 0.0
        %2497 = vmatprep.subr.mxu0 0.0
        %2498 = vmatpush2.msra.mxu0 0.0
        %2499 = vmatprep.subr.mxu0 0.0
        %2500 = vmatpush2.msra.mxu0 0.0
        %2501 = vmatprep.subr.mxu0 0.0
        %2502 = vmatpush2.msra.mxu0 0.0
        %2503 = vmatprep.subr.mxu0 0.0
        %2504 = vmatpush2.msra.mxu0 0.0
        %2505 = vmatprep.subr.mxu0 0.0
        %2506 = vmatpush2.msra.mxu0 0.0
        %2507 = vmatprep.subr.mxu0 0.0
        %2508 = vmatpush2.msra.mxu0 0.0
        %2509 = vmatprep.subr.mxu0 0.0
        %2510 = vmatpush2.msra.mxu0 0.0
        %2511 = vmatprep.subr.mxu0 0.0
        %2512 = vmatpush2.msra.mxu0 0.0
        %2513 = vmatprep.subr.mxu0 0.0
        %2514 = vmatpush2.msra.mxu0 0.0
        %2515 = vmatprep.subr.mxu0 0.0
        %2516 = vmatpush2.msra.mxu0 0.0
        %2517 = vmatprep.subr.mxu0 0.0
        %2518 = vmatpush2.msra.mxu0 0.0
        %2519 = vmatprep.subr.mxu0 0.0
        %2520 = vmatpush2.msra.mxu0 0.0
        %2521 = vmatprep.mubr.f32.mxu0 0.0
        %2522 = vmatmul.mubr.f32.gmra.mxu0 %v2452
        %v2523 = vpop.f32.mrf.mxu0
        %v2524 = vadd.f32 %v2449, %v2523
        %v2525 = vpop.f32.mrf.mxu0
        %2526 = vmatprep.mubr.f32.mxu0 0.0
        %2527 = vmatmul.mubr.f32.gmra.mxu0 %v2455
        %v2528 = vpop.f32.mrf.mxu0
        %v2529 = vadd.f32 %v2449, %v2528
        %v2530 = vpop.f32.mrf.mxu0
        %2531 = vdwg.mxu0
        %v2532 = vadd.f32 %v2293, %v2524
        %v2533 = vadd.f32 %v2294, %v2529
        %p2534 = scmp.eq.s32.totalorder %s26, 1
        // Predicated region
        $region61: #{tpu_custom_call.1} parent=55 // pred_check
          %p2535 = pneg %p2534
        $region62: #{tpu_custom_call.1} parent=55 // pred_check_branch
          %2537 = sbr.rel (%p2535) target = $region64
        $region63: #{tpu_custom_call.1} parent=55 // pred_region
          %v2538 = vld [vmem:[%s7] sm:$0x1]
          %v2539 = vld [vmem:[%s8] sm:$0x1]
          %v2540 = vsel %vm466, %v2532, 0.0
          %2541 = vadd.xlane.f32.xlu0 %v2540
          %v2542 = vpop.xlane.xlu0 %2541
          %v2543 = vsel %vm466, %v2533, 0.0
          %2544 = vadd.xlane.f32.xlu0 %v2543
          %v2545 = vpop.xlane.xlu0 %2544
          %v2546 = vmul.f32 %v2542, %v473
          %v2547 = vmul.f32 %v2545, %v473
          %v2548 = vsub.f32 %v2532, %v2546
          %v2549 = vsub.f32 %v2533, %v2547
          %v2550 = vmul.f32 %v2548, %v2548
          %v2551 = vmul.f32 %v2549, %v2549
          %v2552 = vsel %vm466, %v2550, 0.0
          %2553 = vadd.xlane.f32.xlu0 %v2552
          %v2554 = vpop.xlane.xlu0 %2553
          %v2555 = vsel %vm466, %v2551, 0.0
          %2556 = vadd.xlane.f32.xlu0 %v2555
          %v2557 = vpop.xlane.xlu0 %2556
          %v2558 = vmul.f32 %v2554, 0.032258064
          %v2559 = vmul.f32 %v2557, 0.032258064
          %v2560 = vrsqrt.pop %v2558
          %v2561 = vmul.f32 %v2558, %v2560
          %vm2562 = vcmp.eq.f32.partialorder %v2558, inf
          %v2563 = vsel %vm2562, %v2558, %v2561
          %vm2564 = vcmp.eq.f32.partialorder %v2558, 0.0
          %v2565 = vand.u32 %v2558, 2147483648
          %v2566 = vsel %vm2564, %v2565, %v2563
          %v2567 = vrsqrt.pop %v2559
          %v2568 = vmul.f32 %v2559, %v2567
          %vm2569 = vcmp.eq.f32.partialorder %v2559, inf
          %v2570 = vsel %vm2569, %v2559, %v2568
          %vm2571 = vcmp.eq.f32.partialorder %v2559, 0.0
          %v2572 = vand.u32 %v2559, 2147483648
          %v2573 = vsel %vm2571, %v2572, %v2570
          %v2575 = vlaneseq
          %v2576 = vshrl.u32 %v2575, 7
          %v2577 = vsub.s32 0, %v2576
          %v2578 = vrot.slane %v2538, %v2577
          %v2580 = vmul.f32 %v2578, %v2548
          %v2581 = vmul.f32 %v2578, %v2549
          %v2582 = vadd.f32 %v2566, 1e-06
          %v2583 = vadd.f32 %v2573, 1e-06
          %v2584 = vrcp.pop %v2582
          %v2585 = vmul.f32 %v2580, %v2584
          %v2586 = vrcp.pop %v2583
          %v2587 = vmul.f32 %v2581, %v2586
          %v2589 = vlaneseq
          %v2590 = vshrl.u32 %v2589, 7
          %v2591 = vsub.s32 0, %v2590
          %v2592 = vrot.slane %v2539, %v2591
          %v2594 = vadd.f32 %v2585, %v2592
          %v2595 = vadd.f32 %v2587, %v2592
          %2596 = vst.msk [vmem:[#allocation2] sm:$0xff] %vm466, %v2594
          %2597 = vst.msk [vmem:[#allocation2 + $0x8] sm:$0xff] %vm466, %v2595
        $region64: #{tpu_custom_call.1} parent=55 // pred_fallthru
          _
        %p2598 = scmp.lt.s32.totalorder %s26, 1
        // Predicated region
        $region65: #{tpu_custom_call.1} parent=55 // pred_check
          %p2599 = pneg %p2598
        $region66: #{tpu_custom_call.1} parent=55 // pred_check_branch
          %2601 = sbr.rel (%p2599) target = $region68
        $region67: #{tpu_custom_call.1} parent=55 // pred_region
          %2602 = vst.msk [vmem:[#allocation2] sm:$0xff] %vm466, %v2532
          %2603 = vst.msk [vmem:[#allocation2 + $0x8] sm:$0xff] %vm466, %v2533
        $region68: #{tpu_custom_call.1} parent=55 // pred_fallthru
          _
        // Predicated region
        $region69: #{tpu_custom_call.1} parent=55 // pred_check
          %p2604 = pneg %p275
        $region70: #{tpu_custom_call.1} parent=55 // pred_check_branch
          %2606 = sbr.rel (%p2604) target = $region72
        $region71: #{tpu_custom_call.1} parent=55 // pred_region
          %s2607 = smul.u32 2, %s25
          %s2609 = ssub.s32 256, 256
          %2610 = vsyncadd [#allocation3], %s2609
          %s2611 = smul.addr %s2607, 128
          %s2612 = scalar_lea.hbm %s9, %s2611
          %s2613 = sshll.u32 [#allocation2], 4
          %s2614 = int_to_ptr.vmem [resolvable:$true] %s2613
          %2619 = dma.vmem_to_hbm [thread:$0]  %s2614, 256, %s2612, [#allocation3], 128, 128, 8
        $region72: #{tpu_custom_call.1} parent=55 // pred_fallthru
          _
        // Predicated region
        $region73: #{tpu_custom_call.1} parent=55 // pred_check
          %p2620 = pneg %p275
        $region74: #{tpu_custom_call.1} parent=55 // pred_check_branch
          %2622 = sbr.rel (%p2620) target = $region76
        $region75: #{tpu_custom_call.1} parent=55 // pred_region
          %2623 = dma.done [#allocation3], 256
        $region76: #{tpu_custom_call.1} parent=55 // pred_fallthru
          _
      $region56: #{tpu_custom_call.1} parent=5 // pred_fallthru
        _
      %p2624 = scmp.le.s32.totalorder 2, %s16
      // Predicated region
      $region77: #{tpu_custom_call.1} parent=5 // pred_check
        %p2625 = pneg %p2624
      $region78: #{tpu_custom_call.1} parent=5 // pred_check_branch
        %2627 = sbr.rel (%p2625) target = $region80
      $region79: #{tpu_custom_call.1} parent=5 // pred_region
        %s2628 = ssub.s32 %s16, 2
      $region80: #{tpu_custom_call.1} parent=5 // pred_fallthru
        _
    $region6: #{tpu_custom_call.1} parent=1 // loop_footer
      %s20 = sadd.s32 1, %s16
    $region7: #{tpu_custom_call.1} parent=1 // loop_footer_branch
      %15 = sbr.rel target = $region3
    $region8: #{tpu_custom_call.1} parent=1 // loop_exit
      _
    %2629 = vsyncpa [#allocation3], 1
    %s2630 = scalar_lea.sflag [#allocation3], 1
    %2631 = vsyncpa %s2630, 1

</llo_original>
